<compile_context>
chip_gen: v7x
topology: tpu7x:2x2x1
jax: 0.10.0
libtpu: 0.0.40
codegen_flags: <defaults>
</compile_context>

<pallas_src>
import functools
import math

import jax
import jax.numpy as jnp
from jax.experimental import pallas as pl
from jax.experimental.pallas import tpu as pltpu


def _round_up(x, m):
    return (x + m - 1) // m * m


def _cdiv(a, b):
    return (a + b - 1) // b


def _vmem_capacity_bytes():
    try:
        info = pltpu.get_tpu_info()
        return int(getattr(info, "vmem_capacity_bytes", 64 << 20))
    except Exception:
        return 64 << 20


# ----------------------- Stage 1: projection ------------------------------- #
def _project_kernel(h_ref, w_ref, a12_ref, wh_ref, f_ref):
    wh = jnp.dot(h_ref[...], w_ref[...], preferred_element_type=jnp.float32)
    wh_ref[...] = wh.astype(wh_ref.dtype)          # bf16 store (MXU-native later)
    # One fused thin dot against [F_out, 2] instead of two [F_out, 1] dots.
    # The logit components stay f32 (they feed exp()).
    f_ref[...] = jnp.dot(wh, a12_ref[...], preferred_element_type=jnp.float32)


# -------------- Stage 2: masked online-softmax attention ------------------- #
def _attention_kernel(f1_ref, f2t_ref, adj_ref, wh_ref, out_ref,
                      m_ref, l_ref, acc_ref,
                      *, alpha, concat, tile_k, wh_resident):
    j = pl.program_id(1)

    @pl.when(j == 0)
    def _():
        m_ref[...] = jnp.full_like(m_ref, -jnp.inf)
        l_ref[...] = jnp.zeros_like(l_ref)
        acc_ref[...] = jnp.zeros_like(acc_ref)

    # Attention logits for this (row-tile, neighbour-tile) block.
    # Padded neighbour columns already carry a huge negative bias through f2t
    # (baked in the wrapper), so no per-element iota mask is needed here.
    e = f1_ref[...] + f2t_ref[...]                        # [tile_n, tile_k]
    e = jnp.where(e > 0.0, e, alpha * e)                  # LeakyReLU
    masked = jnp.where(adj_ref[...] > 0, e, jnp.float32(-9e15))

    # Online softmax update (f32).
    m_prev = m_ref[...]
    m_new = jnp.maximum(m_prev, jnp.max(masked, axis=1, keepdims=True))
    corr = jnp.exp(m_prev - m_new)
    p = jnp.exp(masked - m_new)
    l_ref[...] = corr * l_ref[...] + jnp.sum(p, axis=1, keepdims=True)

    if wh_resident:
        # Whole Wh lives in VMEM; slice this neighbour chunk in place.
        start = pl.multiple_of(j * tile_k, 128)
        wh_tile = wh_ref[pl.ds(start, tile_k), :]
    else:
        wh_tile = wh_ref[...]
    acc_ref[...] = corr * acc_ref[...] + jnp.dot(
        p.astype(wh_tile.dtype), wh_tile, preferred_element_type=jnp.float32)
    m_ref[...] = m_new

    @pl.when(j == pl.num_programs(1) - 1)
    def _():
        # 1/denominator folded into the epilogue (EUP slot).
        h_prime = acc_ref[...] * pl.reciprocal(l_ref[...], approx=True)
        if concat:
            # ELU epilogue in f32; exp(x)-1 rounding error here is << tolerance.
            h_prime = jnp.where(h_prime > 0.0, h_prime, jnp.exp(h_prime) - 1.0)
        out_ref[...] = h_prime.astype(out_ref.dtype)


def graph_attention_layer(h, adj, W, a, *, alpha=0.2, concat=True,
                          block_n=256, block_k=512):
    """GAT layer forward.

    h:[N,F_in] f32, adj:[N,N] (any dtype; only used as a `> 0` mask — pass int8
    to cut HBM traffic 4x), W:[F_in,F_out] f32, a:[2*F_out,1] f32.
    """
    N, f_in = h.shape
    f_out = W.shape[1]
    assert adj.shape == (N, N)

    # Neighbour tile: multiple of 128 lanes. Row tile: multiple of 8, divisor of
    # the neighbour tile (keeps padded extents nested). Keep >= 2 row tiles so
    # the "parallel" row axis can shard across v7x's two TensorCores.
    tile_k = min(block_k, _round_up(N, 128))
    tile_n = min(block_n, tile_k)
    if tile_k % tile_n:
        tile_n = math.gcd(tile_n, tile_k)
    while _cdiv(N, tile_n) < 2 and tile_n > 16:
        tile_n //= 2

    n_pad = _round_up(N, tile_k)        # neighbour-axis / Wh / f coverage
    n_rows = _round_up(N, tile_n)       # output-row-axis coverage (<= n_pad)

    # Only h is padded (O(N*F_in), cheap). adj is deliberately NOT padded: the
    # kernel's trailing partial adj blocks read out of bounds, but those values
    # only feed the `> 0` compare; padded columns are neutralised through f2t
    # below and padded rows are dropped by out[:N].
    h_p = jnp.pad(h, ((0, n_pad - N), (0, 0))) if n_pad != N else h
    a12 = jnp.concatenate([a[:f_out], a[f_out:]], axis=1)     # [F_out, 2]

    # ---- Stage 1: projection Wh = h @ W, f = Wh @ [a1 | a2] (few big tiles) ----
    tile_p = n_pad
    max_tile_p = 2048
    if tile_p > max_tile_p:
        tile_p = tile_k
        while tile_p * 2 <= max_tile_p and n_pad % (tile_p * 2) == 0:
            tile_p *= 2
    n_proj_tiles = n_pad // tile_p

    proj_cost = pl.CostEstimate(
        flops=2 * n_pad * f_in * f_out + 4 * n_pad * f_out,
        transcendentals=0,
        bytes_accessed=(4 * n_pad * f_in + 4 * f_in * f_out + 8 * f_out
                        + 2 * n_pad * f_out + 8 * n_pad))
    wh, f = pl.pallas_call(
        _project_kernel,
        out_shape=(jax.ShapeDtypeStruct((n_pad, f_out), jnp.bfloat16),
                   jax.ShapeDtypeStruct((n_pad, 2), jnp.float32)),
        grid_spec=pltpu.PrefetchScalarGridSpec(
            num_scalar_prefetch=0,
            grid=(n_proj_tiles,),
            in_specs=[
                pl.BlockSpec((tile_p, f_in), lambda i: (i, 0)),
                pl.BlockSpec((f_in, f_out), lambda i: (0, 0)),    # resident
                pl.BlockSpec((f_out, 2), lambda i: (0, 0)),       # resident
            ],
            out_specs=[
                pl.BlockSpec((tile_p, f_out), lambda i: (i, 0)),
                pl.BlockSpec((tile_p, 2), lambda i: (i, 0)),
            ]),
        compiler_params=pltpu.CompilerParams(dimension_semantics=("parallel",)),
        cost_estimate=proj_cost,
    )(h_p, W, a12)

    # f2 handed to stage 2 as a lane-dense [1, N_pad] row (tiny O(N) XLA op).
    # Padded columns get a huge negative bias so, after LeakyReLU, any value the
    # out-of-bounds adj compare lets through is << -9e15 -> probability 0.
    f1 = f[:, 0:1]                  # [N_pad, 1]
    f2t = f[:, 1:2].T               # [1, N_pad]
    if n_pad != N:
        col_ids = jax.lax.broadcasted_iota(jnp.int32, (1, n_pad), 1)
        f2t = jnp.where(col_ids < N, f2t, jnp.float32(-1e30))

    # ---- Stage 2: masked online softmax + aggregation (rows x neighbours). ----
    vmem_cap = _vmem_capacity_bytes()
    wh_bytes = n_pad * f_out * wh.dtype.itemsize
    # Keep Wh VMEM-resident (loaded once) when it comfortably fits alongside the
    # double-buffered adj tiles; otherwise stream it per neighbour tile.
    wh_resident = wh_bytes <= min(vmem_cap // 8, 8 << 20)

    n_row_tiles = n_rows // tile_n
    n_col_tiles = n_pad // tile_k

    if wh_resident:
        wh_spec = pl.BlockSpec((n_pad, f_out), lambda i, j: (0, 0))
    else:
        wh_spec = pl.BlockSpec((tile_k, f_out), lambda i, j: (j, 0))

    # Rough per-step VMEM need; only override the scoped limit when it matters
    # (keeps v5e's 16 MiB / v7x's 32 MiB defaults untouched for small problems).
    vmem_est = (2 * tile_n * tile_k * adj.dtype.itemsize
                + 2 * tile_n * 4 + 2 * tile_k * 4
                + (2 * wh_bytes if wh_resident
                   else 2 * tile_k * f_out * wh.dtype.itemsize)
                + 2 * tile_n * f_out * 4
                + tile_n * (2 + f_out) * 4)
    cp_kwargs = dict(dimension_semantics=("parallel", "arbitrary"))
    if vmem_est > (12 << 20):
        cp_kwargs["vmem_limit_bytes"] = int(
            min(vmem_cap - (4 << 20), vmem_est + (8 << 20)))

    attn_cost = pl.CostEstimate(
        flops=2 * n_rows * n_pad * f_out + 10 * n_rows * n_pad,
        transcendentals=n_rows * n_pad,
        bytes_accessed=(N * N * adj.dtype.itemsize
                        + (wh_bytes if wh_resident
                           else n_row_tiles * n_pad * f_out * wh.dtype.itemsize)
                        + 4 * n_pad + 4 * n_rows + 4 * n_rows * f_out))

    kernel = functools.partial(_attention_kernel, alpha=alpha, concat=concat,
                               tile_k=tile_k, wh_resident=wh_resident)
    out = pl.pallas_call(
        kernel,
        out_shape=jax.ShapeDtypeStruct((n_rows, f_out), jnp.float32),
        grid_spec=pltpu.PrefetchScalarGridSpec(
            num_scalar_prefetch=0,
            grid=(n_row_tiles, n_col_tiles),
            in_specs=[
                pl.BlockSpec((tile_n, 1), lambda i, j: (i, 0)),        # f1 (rows)
                pl.BlockSpec((1, tile_k), lambda i, j: (0, j)),        # f2^T (cols)
                pl.BlockSpec((tile_n, tile_k), lambda i, j: (i, j)),   # adj tile
                wh_spec,                                               # Wh
            ],
            out_specs=pl.BlockSpec((tile_n, f_out), lambda i, j: (i, 0)),
            scratch_shapes=[
                pltpu.VMEM((tile_n, 1), jnp.float32),       # running max m
                pltpu.VMEM((tile_n, 1), jnp.float32),       # running denom l
                pltpu.VMEM((tile_n, f_out), jnp.float32),   # running weighted sum
            ]),
        compiler_params=pltpu.CompilerParams(**cp_kwargs),
        cost_estimate=attn_cost,
    )(f1, f2t, adj, wh)

    return out[:N]


def _reference(h, adj, W, a, alpha, concat):
    """Pure-JAX reference mirroring the PyTorch forward (eval mode)."""
    Wh = h @ W
    f_out = W.shape[1]
    e = Wh @ a[:f_out] + (Wh @ a[f_out:]).T
    e = jnp.where(e > 0, e, alpha * e)
    att = jnp.where(adj > 0, e, -9e15)
    att = jax.nn.softmax(att, axis=1)
    hp = att @ Wh
    return jax.nn.elu(hp) if concat else hp


if __name__ == "__main__":
    key = jax.random.PRNGKey(0)
    k_h, k_adj, k_w, k_a = jax.random.split(key, 4)

    N = 500            # deliberately not a tile multiple -> exercises padding path
    in_features = 16
    out_features = 32
    alpha = 0.2
    concat = True

    h = jax.random.normal(k_h, (N, in_features), dtype=jnp.float32)

    # Random symmetric adjacency with self-loops (values in {0,1}).
    adj_rand = (jax.random.uniform(k_adj, (N, N)) > 0.5).astype(jnp.float32)
    adj = jnp.maximum(adj_rand, adj_rand.T)
    adj = jnp.maximum(adj, jnp.eye(N, dtype=jnp.float32))

    # Deterministic Xavier-uniform init (gain=1.414), as in the PyTorch __init__.
    gain = 1.414
    lim_w = gain * (6.0 / (in_features + out_features)) ** 0.5
    W = jax.random.uniform(k_w, (in_features, out_features),
                           minval=-lim_w, maxval=lim_w, dtype=jnp.float32)
    lim_a = gain * (6.0 / (2 * out_features + 1)) ** 0.5
    a = jax.random.uniform(k_a, (2 * out_features, 1),
                           minval=-lim_a, maxval=lim_a, dtype=jnp.float32)

    # adj only participates as a `> 0` mask; store/pass it as int8 (4x less HBM).
    adj_i8 = (adj > 0).astype(jnp.int8)

    out = graph_attention_layer(h, adj_i8, W, a, alpha=alpha, concat=concat)
    out = jax.block_until_ready(out)

    ref = _reference(h, adj, W, a, alpha, concat)
    assert out.shape == (N, out_features)
    # bf16 Wh / bf16 probabilities into the MXU (f32 accumulate) -> ~0.3-0.5%
    # worst-case relative error on the aggregated output.
    assert jnp.allclose(out, ref, atol=5e-3, rtol=1e-2), "mismatch vs reference"

    print("KERNEL_OK")
</pallas_src>

<mosaic_0001>
module attributes {stable_mosaic.version = 11 : i64} {
  func.func @_project_kernel(%arg0: i32, %arg1: memref<512x16xf32, #tpu.memory_space<vmem>>, %arg2: memref<16x32xf32, #tpu.memory_space<vmem>>, %arg3: memref<32x2xf32, #tpu.memory_space<vmem>>, %arg4: memref<512x32xbf16, #tpu.memory_space<vmem>>, %arg5: memref<512x2xf32, #tpu.memory_space<vmem>>) attributes {dimension_semantics = [#tpu.dimension_semantics<parallel>], iteration_bounds = array<i64: 1>, scalar_prefetch = 0 : i64, scratch_operands = 0 : i64, tpu.core_type = #tpu.core_type<tc>, window_params = [{transform_indices = @transform_0, window_bounds = array<i64: 512, 16>}, {pipeline_mode = #tpu.pipeline_mode<synchronous>, transform_indices = @transform_1, window_bounds = array<i64: 16, 32>}, {pipeline_mode = #tpu.pipeline_mode<synchronous>, transform_indices = @transform_2, window_bounds = array<i64: 32, 2>}, {transform_indices = @transform_3, window_bounds = array<i64: 512, 32>}, {transform_indices = @transform_4, window_bounds = array<i64: 512, 2>}]} {
    %c0 = arith.constant 0 : index
    %c0_0 = arith.constant 0 : index
    %0 = vector.load %arg1[%c0, %c0_0] : memref<512x16xf32, #tpu.memory_space<vmem>>, vector<512x16xf32>
    %c0_1 = arith.constant 0 : index
    %c0_2 = arith.constant 0 : index
    %1 = vector.load %arg2[%c0_1, %c0_2] : memref<16x32xf32, #tpu.memory_space<vmem>>, vector<16x32xf32>
    %cst = arith.constant dense<0.000000e+00> : vector<512x32xf32>
    %2 = tpu.matmul %0, %1, %cst {dimension_numbers = #tpu.dot_dimension_numbers<[1], [0], [0], [1], [0, 0, 1, 1], [], []>} : vector<512x16xf32>, vector<16x32xf32>, vector<512x32xf32> -> vector<512x32xf32>
    %3 = arith.truncf %2 : vector<512x32xf32> to vector<512x32xbf16>
    %c0_3 = arith.constant 0 : index
    %c0_4 = arith.constant 0 : index
    %4 = vector.load %arg4[%c0_3, %c0_4] : memref<512x32xbf16, #tpu.memory_space<vmem>>, vector<512x32xbf16>
    tpu.vector_store %arg4[%c0_3, %c0_4], %3 {strides = array<i32>} : memref<512x32xbf16, #tpu.memory_space<vmem>>, vector<512x32xbf16>,
    %c0_5 = arith.constant 0 : index
    %c0_6 = arith.constant 0 : index
    %5 = vector.load %arg3[%c0_5, %c0_6] : memref<32x2xf32, #tpu.memory_space<vmem>>, vector<32x2xf32>
    %cst_7 = arith.constant dense<0.000000e+00> : vector<512x2xf32>
    %6 = tpu.matmul %2, %5, %cst_7 {dimension_numbers = #tpu.dot_dimension_numbers<[1], [0], [0], [1], [0, 0, 1, 1], [], []>} : vector<512x32xf32>, vector<32x2xf32>, vector<512x2xf32> -> vector<512x2xf32>
    %c0_8 = arith.constant 0 : index
    %c0_9 = arith.constant 0 : index
    %7 = vector.load %arg5[%c0_8, %c0_9] : memref<512x2xf32, #tpu.memory_space<vmem>>, vector<512x2xf32>
    tpu.vector_store %arg5[%c0_8, %c0_9], %6 {strides = array<i32>} : memref<512x2xf32, #tpu.memory_space<vmem>>, vector<512x2xf32>,
    return
  }
  func.func @transform_0(%arg0: i32) -> (i32, i32) {
    %c0_i32 = arith.constant 0 : i32
    %c0_i32_0 = arith.constant 0 : i32
    return %arg0, %c0_i32 : i32, i32
  }
  func.func @transform_1(%arg0: i32) -> (i32, i32) {
    %c0_i32 = arith.constant 0 : i32
    %c0_i32_0 = arith.constant 0 : i32
    %c0_i32_1 = arith.constant 0 : i32
    return %c0_i32, %c0_i32_0 : i32, i32
  }
  func.func @transform_2(%arg0: i32) -> (i32, i32) {
    %c0_i32 = arith.constant 0 : i32
    %c0_i32_0 = arith.constant 0 : i32
    %c0_i32_1 = arith.constant 0 : i32
    return %c0_i32, %c0_i32_0 : i32, i32
  }
  func.func @transform_3(%arg0: i32) -> (i32, i32) {
    %c0_i32 = arith.constant 0 : i32
    %c0_i32_0 = arith.constant 0 : i32
    return %arg0, %c0_i32 : i32, i32
  }
  func.func @transform_4(%arg0: i32) -> (i32, i32) {
    %c0_i32 = arith.constant 0 : i32
    %c0_i32_0 = arith.constant 0 : i32
    return %arg0, %c0_i32 : i32, i32
  }
}

</mosaic_0001>

<llo_original>
// kernel: tpu_custom_call.1
$region0: #{tpu_custom_call.1}
  #allocation0 [shape = 'u32[]', space=smem, size = 0x4, offset = 0x4, fixed_abs, tag = 'smem constant byte address 0x4 - core index']
  #allocation1 [shape = 'u32[144,128]{1,0:T(1,128)}', space=vmem, size = 0x12000, scoped, tag = 'internal scratch']
  %s0 = inlined_call_operand.vmem [shape: f32[512,16], index: 0, kind: input, shape index: {}]
  %s1 = inlined_call_operand.vmem [shape: f32[16,32], index: 1, kind: input, shape index: {}]
  %s2 = inlined_call_operand.vmem [shape: f32[32,2], index: 2, kind: input, shape index: {}]
  %s3 = inlined_call_operand.vmem [shape: bf16[512,32], index: 3, kind: output, shape index: {0}]
  %s4 = inlined_call_operand.vmem [shape: f32[512,2], index: 4, kind: output, shape index: {1}]
  %5 = xla_tuple %s3, %s4
  %s6 = sld [smem:[#allocation0]]
  $region30: #{tpu_custom_call.1} parent=0
    _
  %s8 = ssub.s32 1, %s6
  %s9 = scalar_select 0, %s8, %s6
  // Predicated region
  $region2: #{tpu_custom_call.1} parent=0 // pred_check
    _
  $region3: #{tpu_custom_call.1} parent=0 // pred_check_branch
    %11 = sbr.rel (0) target = $region5
  $region4: #{tpu_custom_call.1} parent=0 // pred_region
    _
  $region5: #{tpu_custom_call.1} parent=0 // pred_fallthru
    _
  // Predicated region
  $region6: #{tpu_custom_call.1} parent=0 // pred_check
    _
  $region7: #{tpu_custom_call.1} parent=0 // pred_check_branch
    %13 = sbr.rel (0) target = $region9
  $region8: #{tpu_custom_call.1} parent=0 // pred_region
    _
  $region9: #{tpu_custom_call.1} parent=0 // pred_fallthru
    _
  // Predicated region
  $region10: #{tpu_custom_call.1} parent=0 // pred_check
    _
  $region11: #{tpu_custom_call.1} parent=0 // pred_check_branch
    %15 = sbr.rel (0) target = $region13
  $region12: #{tpu_custom_call.1} parent=0 // pred_region
    _
  $region13: #{tpu_custom_call.1} parent=0 // pred_fallthru
    _
  %v16 = vld [vmem:[%s0] sm:$0xff]
  %v17 = vld [vmem:[%s0 + $0x8] sm:$0xff]
  %v18 = vld [vmem:[%s0 + $0x10] sm:$0xff]
  %v19 = vld [vmem:[%s0 + $0x18] sm:$0xff]
  %v20 = vld [vmem:[%s0 + $0x20] sm:$0xff]
  %v21 = vld [vmem:[%s0 + $0x28] sm:$0xff]
  %v22 = vld [vmem:[%s0 + $0x30] sm:$0xff]
  %v23 = vld [vmem:[%s0 + $0x38] sm:$0xff]
  %v24 = vld [vmem:[%s0 + $0x40] sm:$0xff]
  %v25 = vld [vmem:[%s0 + $0x48] sm:$0xff]
  %v26 = vld [vmem:[%s0 + $0x50] sm:$0xff]
  %v27 = vld [vmem:[%s0 + $0x58] sm:$0xff]
  %v28 = vld [vmem:[%s0 + $0x60] sm:$0xff]
  %v29 = vld [vmem:[%s0 + $0x68] sm:$0xff]
  %v30 = vld [vmem:[%s0 + $0x70] sm:$0xff]
  %v31 = vld [vmem:[%s0 + $0x78] sm:$0xff]
  %v32 = vld [vmem:[%s0 + $0x80] sm:$0xff]
  %v33 = vld [vmem:[%s0 + $0x88] sm:$0xff]
  %v34 = vld [vmem:[%s0 + $0x90] sm:$0xff]
  %v35 = vld [vmem:[%s0 + $0x98] sm:$0xff]
  %v36 = vld [vmem:[%s0 + $0xa0] sm:$0xff]
  %v37 = vld [vmem:[%s0 + $0xa8] sm:$0xff]
  %v38 = vld [vmem:[%s0 + $0xb0] sm:$0xff]
  %v39 = vld [vmem:[%s0 + $0xb8] sm:$0xff]
  %v40 = vld [vmem:[%s0 + $0xc0] sm:$0xff]
  %v41 = vld [vmem:[%s0 + $0xc8] sm:$0xff]
  %v42 = vld [vmem:[%s0 + $0xd0] sm:$0xff]
  %v43 = vld [vmem:[%s0 + $0xd8] sm:$0xff]
  %v44 = vld [vmem:[%s0 + $0xe0] sm:$0xff]
  %v45 = vld [vmem:[%s0 + $0xe8] sm:$0xff]
  %v46 = vld [vmem:[%s0 + $0xf0] sm:$0xff]
  %v47 = vld [vmem:[%s0 + $0xf8] sm:$0xff]
  %v48 = vld [vmem:[%s0 + $0x100] sm:$0xff]
  %v49 = vld [vmem:[%s0 + $0x108] sm:$0xff]
  %v50 = vld [vmem:[%s0 + $0x110] sm:$0xff]
  %v51 = vld [vmem:[%s0 + $0x118] sm:$0xff]
  %v52 = vld [vmem:[%s0 + $0x120] sm:$0xff]
  %v53 = vld [vmem:[%s0 + $0x128] sm:$0xff]
  %v54 = vld [vmem:[%s0 + $0x130] sm:$0xff]
  %v55 = vld [vmem:[%s0 + $0x138] sm:$0xff]
  %v56 = vld [vmem:[%s0 + $0x140] sm:$0xff]
  %v57 = vld [vmem:[%s0 + $0x148] sm:$0xff]
  %v58 = vld [vmem:[%s0 + $0x150] sm:$0xff]
  %v59 = vld [vmem:[%s0 + $0x158] sm:$0xff]
  %v60 = vld [vmem:[%s0 + $0x160] sm:$0xff]
  %v61 = vld [vmem:[%s0 + $0x168] sm:$0xff]
  %v62 = vld [vmem:[%s0 + $0x170] sm:$0xff]
  %v63 = vld [vmem:[%s0 + $0x178] sm:$0xff]
  %v64 = vld [vmem:[%s0 + $0x180] sm:$0xff]
  %v65 = vld [vmem:[%s0 + $0x188] sm:$0xff]
  %v66 = vld [vmem:[%s0 + $0x190] sm:$0xff]
  %v67 = vld [vmem:[%s0 + $0x198] sm:$0xff]
  %v68 = vld [vmem:[%s0 + $0x1a0] sm:$0xff]
  %v69 = vld [vmem:[%s0 + $0x1a8] sm:$0xff]
  %v70 = vld [vmem:[%s0 + $0x1b0] sm:$0xff]
  %v71 = vld [vmem:[%s0 + $0x1b8] sm:$0xff]
  %v72 = vld [vmem:[%s0 + $0x1c0] sm:$0xff]
  %v73 = vld [vmem:[%s0 + $0x1c8] sm:$0xff]
  %v74 = vld [vmem:[%s0 + $0x1d0] sm:$0xff]
  %v75 = vld [vmem:[%s0 + $0x1d8] sm:$0xff]
  %v76 = vld [vmem:[%s0 + $0x1e0] sm:$0xff]
  %v77 = vld [vmem:[%s0 + $0x1e8] sm:$0xff]
  %v78 = vld [vmem:[%s0 + $0x1f0] sm:$0xff]
  %v79 = vld [vmem:[%s0 + $0x1f8] sm:$0xff]
  %v80 = vld [vmem:[%s1] sm:$0xff]
  %v81 = vld [vmem:[%s1 + $0x8] sm:$0xff]
  %vm82 = vcmask 130048
  %v84 = vsel %vm82, %v16, 0
  %v87 = vsel %vm82, %v17, 0
  %v90 = vsel %vm82, %v18, 0
  %v93 = vsel %vm82, %v19, 0
  %v96 = vsel %vm82, %v20, 0
  %v99 = vsel %vm82, %v21, 0
  %v102 = vsel %vm82, %v22, 0
  %v105 = vsel %vm82, %v23, 0
  %v108 = vsel %vm82, %v24, 0
  %v111 = vsel %vm82, %v25, 0
  %v114 = vsel %vm82, %v26, 0
  %v117 = vsel %vm82, %v27, 0
  %v120 = vsel %vm82, %v28, 0
  %v123 = vsel %vm82, %v29, 0
  %v126 = vsel %vm82, %v30, 0
  %v129 = vsel %vm82, %v31, 0
  %v132 = vsel %vm82, %v32, 0
  %v135 = vsel %vm82, %v33, 0
  %v138 = vsel %vm82, %v34, 0
  %v141 = vsel %vm82, %v35, 0
  %v144 = vsel %vm82, %v36, 0
  %v147 = vsel %vm82, %v37, 0
  %v150 = vsel %vm82, %v38, 0
  %v153 = vsel %vm82, %v39, 0
  %v156 = vsel %vm82, %v40, 0
  %v159 = vsel %vm82, %v41, 0
  %v162 = vsel %vm82, %v42, 0
  %v165 = vsel %vm82, %v43, 0
  %v168 = vsel %vm82, %v44, 0
  %v171 = vsel %vm82, %v45, 0
  %v174 = vsel %vm82, %v46, 0
  %v177 = vsel %vm82, %v47, 0
  %v180 = vsel %vm82, %v48, 0
  %v183 = vsel %vm82, %v49, 0
  %v186 = vsel %vm82, %v50, 0
  %v189 = vsel %vm82, %v51, 0
  %v192 = vsel %vm82, %v52, 0
  %v195 = vsel %vm82, %v53, 0
  %v198 = vsel %vm82, %v54, 0
  %v201 = vsel %vm82, %v55, 0
  %v204 = vsel %vm82, %v56, 0
  %v207 = vsel %vm82, %v57, 0
  %v210 = vsel %vm82, %v58, 0
  %v213 = vsel %vm82, %v59, 0
  %v216 = vsel %vm82, %v60, 0
  %v219 = vsel %vm82, %v61, 0
  %v222 = vsel %vm82, %v62, 0
  %v225 = vsel %vm82, %v63, 0
  %v228 = vsel %vm82, %v64, 0
  %v231 = vsel %vm82, %v65, 0
  %v234 = vsel %vm82, %v66, 0
  %v237 = vsel %vm82, %v67, 0
  %v240 = vsel %vm82, %v68, 0
  %v243 = vsel %vm82, %v69, 0
  %v246 = vsel %vm82, %v70, 0
  %v249 = vsel %vm82, %v71, 0
  %v252 = vsel %vm82, %v72, 0
  %v255 = vsel %vm82, %v73, 0
  %v258 = vsel %vm82, %v74, 0
  %v261 = vsel %vm82, %v75, 0
  %v264 = vsel %vm82, %v76, 0
  %v267 = vsel %vm82, %v77, 0
  %v270 = vsel %vm82, %v78, 0
  %v273 = vsel %vm82, %v79, 0
  %275 = vmatprep.subr.mxu0 0.0
  %276 = vmatpush1.msra.mxu0 %v80
  %277 = vmatprep.subr.mxu0 0.0
  %278 = vmatpush1.msra.mxu0 %v81
  %279 = vmatprep.subr.mxu0 0.0
  %280 = vmatpush1.msra.mxu0 0.0
  %281 = vmatprep.subr.mxu0 0.0
  %282 = vmatpush1.msra.mxu0 0.0
  %283 = vmatprep.subr.mxu0 0.0
  %284 = vmatpush1.msra.mxu0 0.0
  %285 = vmatprep.subr.mxu0 0.0
  %286 = vmatpush1.msra.mxu0 0.0
  %287 = vmatprep.subr.mxu0 0.0
  %288 = vmatpush1.msra.mxu0 0.0
  %289 = vmatprep.subr.mxu0 0.0
  %290 = vmatpush1.msra.mxu0 0.0
  %291 = vmatprep.subr.mxu0 0.0
  %292 = vmatpush1.msra.mxu0 0.0
  %293 = vmatprep.subr.mxu0 0.0
  %294 = vmatpush1.msra.mxu0 0.0
  %295 = vmatprep.subr.mxu0 0.0
  %296 = vmatpush1.msra.mxu0 0.0
  %297 = vmatprep.subr.mxu0 0.0
  %298 = vmatpush1.msra.mxu0 0.0
  %299 = vmatprep.subr.mxu0 0.0
  %300 = vmatpush1.msra.mxu0 0.0
  %301 = vmatprep.subr.mxu0 0.0
  %302 = vmatpush1.msra.mxu0 0.0
  %303 = vmatprep.subr.mxu0 0.0
  %304 = vmatpush1.msra.mxu0 0.0
  %305 = vmatprep.subr.mxu0 0.0
  %306 = vmatpush1.msra.mxu0 0.0
  %307 = vmatprep.subr.mxu0 0.0
  %308 = vmatpush1.msra.mxu0 0.0
  %309 = vmatprep.subr.mxu0 0.0
  %310 = vmatpush1.msra.mxu0 0.0
  %311 = vmatprep.subr.mxu0 0.0
  %312 = vmatpush1.msra.mxu0 0.0
  %313 = vmatprep.subr.mxu0 0.0
  %314 = vmatpush1.msra.mxu0 0.0
  %315 = vmatprep.subr.mxu0 0.0
  %316 = vmatpush1.msra.mxu0 0.0
  %317 = vmatprep.subr.mxu0 0.0
  %318 = vmatpush1.msra.mxu0 0.0
  %319 = vmatprep.subr.mxu0 0.0
  %320 = vmatpush1.msra.mxu0 0.0
  %321 = vmatprep.subr.mxu0 0.0
  %322 = vmatpush1.msra.mxu0 0.0
  %323 = vmatprep.subr.mxu0 0.0
  %324 = vmatpush1.msra.mxu0 0.0
  %325 = vmatprep.subr.mxu0 0.0
  %326 = vmatpush1.msra.mxu0 0.0
  %327 = vmatprep.subr.mxu0 0.0
  %328 = vmatpush1.msra.mxu0 0.0
  %329 = vmatprep.subr.mxu0 0.0
  %330 = vmatpush1.msra.mxu0 0.0
  %331 = vmatprep.subr.mxu0 0.0
  %332 = vmatpush1.msra.mxu0 0.0
  %333 = vmatprep.subr.mxu0 0.0
  %334 = vmatpush1.msra.mxu0 0.0
  %335 = vmatprep.subr.mxu0 0.0
  %336 = vmatpush1.msra.mxu0 0.0
  %337 = vmatprep.subr.mxu0 0.0
  %338 = vmatpush1.msra.mxu0 0.0
  %339 = vmatprep.mubr.f32.mxu0 0.0
  %340 = vmatmul.mubr.f32.gmra.mrb[0].mxu0 %v84
  %v341 = vpop.f32.mrb[0].mxu0
  %v342 = vadd.f32 0.0, %v341
  %v343 = vpop.f32.mrb[0].mxu0
  %344 = vmatprep.mubr.f32.mxu0 0.0
  %345 = vmatmul.mubr.f32.gmra.mrb[0].mxu0 %v87
  %v346 = vpop.f32.mrb[0].mxu0
  %v347 = vadd.f32 0.0, %v346
  %v348 = vpop.f32.mrb[0].mxu0
  %349 = vmatprep.mubr.f32.mxu0 0.0
  %350 = vmatmul.mubr.f32.gmra.mrb[0].mxu0 %v90
  %v351 = vpop.f32.mrb[0].mxu0
  %v352 = vadd.f32 0.0, %v351
  %v353 = vpop.f32.mrb[0].mxu0
  %354 = vmatprep.mubr.f32.mxu0 0.0
  %355 = vmatmul.mubr.f32.gmra.mrb[0].mxu0 %v93
  %v356 = vpop.f32.mrb[0].mxu0
  %v357 = vadd.f32 0.0, %v356
  %v358 = vpop.f32.mrb[0].mxu0
  %359 = vmatprep.mubr.f32.mxu0 0.0
  %360 = vmatmul.mubr.f32.gmra.mrb[0].mxu0 %v96
  %v361 = vpop.f32.mrb[0].mxu0
  %v362 = vadd.f32 0.0, %v361
  %v363 = vpop.f32.mrb[0].mxu0
  %364 = vmatprep.mubr.f32.mxu0 0.0
  %365 = vmatmul.mubr.f32.gmra.mrb[0].mxu0 %v99
  %v366 = vpop.f32.mrb[0].mxu0
  %v367 = vadd.f32 0.0, %v366
  %v368 = vpop.f32.mrb[0].mxu0
  %369 = vmatprep.mubr.f32.mxu0 0.0
  %370 = vmatmul.mubr.f32.gmra.mrb[0].mxu0 %v102
  %v371 = vpop.f32.mrb[0].mxu0
  %v372 = vadd.f32 0.0, %v371
  %v373 = vpop.f32.mrb[0].mxu0
  %374 = vmatprep.mubr.f32.mxu0 0.0
  %375 = vmatmul.mubr.f32.gmra.mrb[0].mxu0 %v105
  %v376 = vpop.f32.mrb[0].mxu0
  %v377 = vadd.f32 0.0, %v376
  %v378 = vpop.f32.mrb[0].mxu0
  %379 = vmatprep.mubr.f32.mxu0 0.0
  %380 = vmatmul.mubr.f32.gmra.mrb[0].mxu0 %v108
  %v381 = vpop.f32.mrb[0].mxu0
  %v382 = vadd.f32 0.0, %v381
  %v383 = vpop.f32.mrb[0].mxu0
  %384 = vmatprep.mubr.f32.mxu0 0.0
  %385 = vmatmul.mubr.f32.gmra.mrb[0].mxu0 %v111
  %v386 = vpop.f32.mrb[0].mxu0
  %v387 = vadd.f32 0.0, %v386
  %v388 = vpop.f32.mrb[0].mxu0
  %389 = vmatprep.mubr.f32.mxu0 0.0
  %390 = vmatmul.mubr.f32.gmra.mrb[0].mxu0 %v114
  %v391 = vpop.f32.mrb[0].mxu0
  %v392 = vadd.f32 0.0, %v391
  %v393 = vpop.f32.mrb[0].mxu0
  %394 = vmatprep.mubr.f32.mxu0 0.0
  %395 = vmatmul.mubr.f32.gmra.mrb[0].mxu0 %v117
  %v396 = vpop.f32.mrb[0].mxu0
  %v397 = vadd.f32 0.0, %v396
  %v398 = vpop.f32.mrb[0].mxu0
  %399 = vmatprep.mubr.f32.mxu0 0.0
  %400 = vmatmul.mubr.f32.gmra.mrb[0].mxu0 %v120
  %v401 = vpop.f32.mrb[0].mxu0
  %v402 = vadd.f32 0.0, %v401
  %v403 = vpop.f32.mrb[0].mxu0
  %404 = vmatprep.mubr.f32.mxu0 0.0
  %405 = vmatmul.mubr.f32.gmra.mrb[0].mxu0 %v123
  %v406 = vpop.f32.mrb[0].mxu0
  %v407 = vadd.f32 0.0, %v406
  %v408 = vpop.f32.mrb[0].mxu0
  %409 = vmatprep.mubr.f32.mxu0 0.0
  %410 = vmatmul.mubr.f32.gmra.mrb[0].mxu0 %v126
  %v411 = vpop.f32.mrb[0].mxu0
  %v412 = vadd.f32 0.0, %v411
  %v413 = vpop.f32.mrb[0].mxu0
  %414 = vmatprep.mubr.f32.mxu0 0.0
  %415 = vmatmul.mubr.f32.gmra.mrb[0].mxu0 %v129
  %v416 = vpop.f32.mrb[0].mxu0
  %v417 = vadd.f32 0.0, %v416
  %v418 = vpop.f32.mrb[0].mxu0
  %419 = vmatprep.mubr.f32.mxu0 0.0
  %420 = vmatmul.mubr.f32.gmra.mrb[0].mxu0 %v132
  %v421 = vpop.f32.mrb[0].mxu0
  %v422 = vadd.f32 0.0, %v421
  %v423 = vpop.f32.mrb[0].mxu0
  %424 = vmatprep.mubr.f32.mxu0 0.0
  %425 = vmatmul.mubr.f32.gmra.mrb[0].mxu0 %v135
  %v426 = vpop.f32.mrb[0].mxu0
  %v427 = vadd.f32 0.0, %v426
  %v428 = vpop.f32.mrb[0].mxu0
  %429 = vmatprep.mubr.f32.mxu0 0.0
  %430 = vmatmul.mubr.f32.gmra.mrb[0].mxu0 %v138
  %v431 = vpop.f32.mrb[0].mxu0
  %v432 = vadd.f32 0.0, %v431
  %v433 = vpop.f32.mrb[0].mxu0
  %434 = vmatprep.mubr.f32.mxu0 0.0
  %435 = vmatmul.mubr.f32.gmra.mrb[0].mxu0 %v141
  %v436 = vpop.f32.mrb[0].mxu0
  %v437 = vadd.f32 0.0, %v436
  %v438 = vpop.f32.mrb[0].mxu0
  %439 = vmatprep.mubr.f32.mxu0 0.0
  %440 = vmatmul.mubr.f32.gmra.mrb[0].mxu0 %v144
  %v441 = vpop.f32.mrb[0].mxu0
  %v442 = vadd.f32 0.0, %v441
  %v443 = vpop.f32.mrb[0].mxu0
  %444 = vmatprep.mubr.f32.mxu0 0.0
  %445 = vmatmul.mubr.f32.gmra.mrb[0].mxu0 %v147
  %v446 = vpop.f32.mrb[0].mxu0
  %v447 = vadd.f32 0.0, %v446
  %v448 = vpop.f32.mrb[0].mxu0
  %449 = vmatprep.mubr.f32.mxu0 0.0
  %450 = vmatmul.mubr.f32.gmra.mrb[0].mxu0 %v150
  %v451 = vpop.f32.mrb[0].mxu0
  %v452 = vadd.f32 0.0, %v451
  %v453 = vpop.f32.mrb[0].mxu0
  %454 = vmatprep.mubr.f32.mxu0 0.0
  %455 = vmatmul.mubr.f32.gmra.mrb[0].mxu0 %v153
  %v456 = vpop.f32.mrb[0].mxu0
  %v457 = vadd.f32 0.0, %v456
  %v458 = vpop.f32.mrb[0].mxu0
  %459 = vmatprep.mubr.f32.mxu0 0.0
  %460 = vmatmul.mubr.f32.gmra.mrb[0].mxu0 %v156
  %v461 = vpop.f32.mrb[0].mxu0
  %v462 = vadd.f32 0.0, %v461
  %v463 = vpop.f32.mrb[0].mxu0
  %464 = vmatprep.mubr.f32.mxu0 0.0
  %465 = vmatmul.mubr.f32.gmra.mrb[0].mxu0 %v159
  %v466 = vpop.f32.mrb[0].mxu0
  %v467 = vadd.f32 0.0, %v466
  %v468 = vpop.f32.mrb[0].mxu0
  %469 = vmatprep.mubr.f32.mxu0 0.0
  %470 = vmatmul.mubr.f32.gmra.mrb[0].mxu0 %v162
  %v471 = vpop.f32.mrb[0].mxu0
  %v472 = vadd.f32 0.0, %v471
  %v473 = vpop.f32.mrb[0].mxu0
  %474 = vmatprep.mubr.f32.mxu0 0.0
  %475 = vmatmul.mubr.f32.gmra.mrb[0].mxu0 %v165
  %v476 = vpop.f32.mrb[0].mxu0
  %v477 = vadd.f32 0.0, %v476
  %v478 = vpop.f32.mrb[0].mxu0
  %479 = vmatprep.mubr.f32.mxu0 0.0
  %480 = vmatmul.mubr.f32.gmra.mrb[0].mxu0 %v168
  %v481 = vpop.f32.mrb[0].mxu0
  %v482 = vadd.f32 0.0, %v481
  %v483 = vpop.f32.mrb[0].mxu0
  %484 = vmatprep.mubr.f32.mxu0 0.0
  %485 = vmatmul.mubr.f32.gmra.mrb[0].mxu0 %v171
  %v486 = vpop.f32.mrb[0].mxu0
  %v487 = vadd.f32 0.0, %v486
  %v488 = vpop.f32.mrb[0].mxu0
  %489 = vmatprep.mubr.f32.mxu0 0.0
  %490 = vmatmul.mubr.f32.gmra.mrb[0].mxu0 %v174
  %v491 = vpop.f32.mrb[0].mxu0
  %v492 = vadd.f32 0.0, %v491
  %v493 = vpop.f32.mrb[0].mxu0
  %494 = vmatprep.mubr.f32.mxu0 0.0
  %495 = vmatmul.mubr.f32.gmra.mrb[0].mxu0 %v177
  %v496 = vpop.f32.mrb[0].mxu0
  %v497 = vadd.f32 0.0, %v496
  %v498 = vpop.f32.mrb[0].mxu0
  %499 = vmatprep.mubr.f32.mxu0 0.0
  %500 = vmatmul.mubr.f32.gmra.mrb[0].mxu0 %v180
  %v501 = vpop.f32.mrb[0].mxu0
  %v502 = vadd.f32 0.0, %v501
  %v503 = vpop.f32.mrb[0].mxu0
  %504 = vmatprep.mubr.f32.mxu0 0.0
  %505 = vmatmul.mubr.f32.gmra.mrb[0].mxu0 %v183
  %v506 = vpop.f32.mrb[0].mxu0
  %v507 = vadd.f32 0.0, %v506
  %v508 = vpop.f32.mrb[0].mxu0
  %509 = vmatprep.mubr.f32.mxu0 0.0
  %510 = vmatmul.mubr.f32.gmra.mrb[0].mxu0 %v186
  %v511 = vpop.f32.mrb[0].mxu0
  %v512 = vadd.f32 0.0, %v511
  %v513 = vpop.f32.mrb[0].mxu0
  %514 = vmatprep.mubr.f32.mxu0 0.0
  %515 = vmatmul.mubr.f32.gmra.mrb[0].mxu0 %v189
  %v516 = vpop.f32.mrb[0].mxu0
  %v517 = vadd.f32 0.0, %v516
  %v518 = vpop.f32.mrb[0].mxu0
  %519 = vmatprep.mubr.f32.mxu0 0.0
  %520 = vmatmul.mubr.f32.gmra.mrb[0].mxu0 %v192
  %v521 = vpop.f32.mrb[0].mxu0
  %v522 = vadd.f32 0.0, %v521
  %v523 = vpop.f32.mrb[0].mxu0
  %524 = vmatprep.mubr.f32.mxu0 0.0
  %525 = vmatmul.mubr.f32.gmra.mrb[0].mxu0 %v195
  %v526 = vpop.f32.mrb[0].mxu0
  %v527 = vadd.f32 0.0, %v526
  %v528 = vpop.f32.mrb[0].mxu0
  %529 = vmatprep.mubr.f32.mxu0 0.0
  %530 = vmatmul.mubr.f32.gmra.mrb[0].mxu0 %v198
  %v531 = vpop.f32.mrb[0].mxu0
  %v532 = vadd.f32 0.0, %v531
  %v533 = vpop.f32.mrb[0].mxu0
  %534 = vmatprep.mubr.f32.mxu0 0.0
  %535 = vmatmul.mubr.f32.gmra.mrb[0].mxu0 %v201
  %v536 = vpop.f32.mrb[0].mxu0
  %v537 = vadd.f32 0.0, %v536
  %v538 = vpop.f32.mrb[0].mxu0
  %539 = vmatprep.mubr.f32.mxu0 0.0
  %540 = vmatmul.mubr.f32.gmra.mrb[0].mxu0 %v204
  %v541 = vpop.f32.mrb[0].mxu0
  %v542 = vadd.f32 0.0, %v541
  %v543 = vpop.f32.mrb[0].mxu0
  %544 = vmatprep.mubr.f32.mxu0 0.0
  %545 = vmatmul.mubr.f32.gmra.mrb[0].mxu0 %v207
  %v546 = vpop.f32.mrb[0].mxu0
  %v547 = vadd.f32 0.0, %v546
  %v548 = vpop.f32.mrb[0].mxu0
  %549 = vmatprep.mubr.f32.mxu0 0.0
  %550 = vmatmul.mubr.f32.gmra.mrb[0].mxu0 %v210
  %v551 = vpop.f32.mrb[0].mxu0
  %v552 = vadd.f32 0.0, %v551
  %v553 = vpop.f32.mrb[0].mxu0
  %554 = vmatprep.mubr.f32.mxu0 0.0
  %555 = vmatmul.mubr.f32.gmra.mrb[0].mxu0 %v213
  %v556 = vpop.f32.mrb[0].mxu0
  %v557 = vadd.f32 0.0, %v556
  %v558 = vpop.f32.mrb[0].mxu0
  %559 = vmatprep.mubr.f32.mxu0 0.0
  %560 = vmatmul.mubr.f32.gmra.mrb[0].mxu0 %v216
  %v561 = vpop.f32.mrb[0].mxu0
  %v562 = vadd.f32 0.0, %v561
  %v563 = vpop.f32.mrb[0].mxu0
  %564 = vmatprep.mubr.f32.mxu0 0.0
  %565 = vmatmul.mubr.f32.gmra.mrb[0].mxu0 %v219
  %v566 = vpop.f32.mrb[0].mxu0
  %v567 = vadd.f32 0.0, %v566
  %v568 = vpop.f32.mrb[0].mxu0
  %569 = vmatprep.mubr.f32.mxu0 0.0
  %570 = vmatmul.mubr.f32.gmra.mrb[0].mxu0 %v222
  %v571 = vpop.f32.mrb[0].mxu0
  %v572 = vadd.f32 0.0, %v571
  %v573 = vpop.f32.mrb[0].mxu0
  %574 = vmatprep.mubr.f32.mxu0 0.0
  %575 = vmatmul.mubr.f32.gmra.mrb[0].mxu0 %v225
  %v576 = vpop.f32.mrb[0].mxu0
  %v577 = vadd.f32 0.0, %v576
  %v578 = vpop.f32.mrb[0].mxu0
  %579 = vmatprep.mubr.f32.mxu0 0.0
  %580 = vmatmul.mubr.f32.gmra.mrb[0].mxu0 %v228
  %v581 = vpop.f32.mrb[0].mxu0
  %v582 = vadd.f32 0.0, %v581
  %v583 = vpop.f32.mrb[0].mxu0
  %584 = vmatprep.mubr.f32.mxu0 0.0
  %585 = vmatmul.mubr.f32.gmra.mrb[0].mxu0 %v231
  %v586 = vpop.f32.mrb[0].mxu0
  %v587 = vadd.f32 0.0, %v586
  %v588 = vpop.f32.mrb[0].mxu0
  %589 = vmatprep.mubr.f32.mxu0 0.0
  %590 = vmatmul.mubr.f32.gmra.mrb[0].mxu0 %v234
  %v591 = vpop.f32.mrb[0].mxu0
  %v592 = vadd.f32 0.0, %v591
  %v593 = vpop.f32.mrb[0].mxu0
  %594 = vmatprep.mubr.f32.mxu0 0.0
  %595 = vmatmul.mubr.f32.gmra.mrb[0].mxu0 %v237
  %v596 = vpop.f32.mrb[0].mxu0
  %v597 = vadd.f32 0.0, %v596
  %v598 = vpop.f32.mrb[0].mxu0
  %599 = vmatprep.mubr.f32.mxu0 0.0
  %600 = vmatmul.mubr.f32.gmra.mrb[0].mxu0 %v240
  %v601 = vpop.f32.mrb[0].mxu0
  %v602 = vadd.f32 0.0, %v601
  %v603 = vpop.f32.mrb[0].mxu0
  %604 = vmatprep.mubr.f32.mxu0 0.0
  %605 = vmatmul.mubr.f32.gmra.mrb[0].mxu0 %v243
  %v606 = vpop.f32.mrb[0].mxu0
  %v607 = vadd.f32 0.0, %v606
  %v608 = vpop.f32.mrb[0].mxu0
  %609 = vmatprep.mubr.f32.mxu0 0.0
  %610 = vmatmul.mubr.f32.gmra.mrb[0].mxu0 %v246
  %v611 = vpop.f32.mrb[0].mxu0
  %v612 = vadd.f32 0.0, %v611
  %v613 = vpop.f32.mrb[0].mxu0
  %614 = vmatprep.mubr.f32.mxu0 0.0
  %615 = vmatmul.mubr.f32.gmra.mrb[0].mxu0 %v249
  %v616 = vpop.f32.mrb[0].mxu0
  %v617 = vadd.f32 0.0, %v616
  %v618 = vpop.f32.mrb[0].mxu0
  %619 = vmatprep.mubr.f32.mxu0 0.0
  %620 = vmatmul.mubr.f32.gmra.mrb[0].mxu0 %v252
  %v621 = vpop.f32.mrb[0].mxu0
  %v622 = vadd.f32 0.0, %v621
  %v623 = vpop.f32.mrb[0].mxu0
  %624 = vmatprep.mubr.f32.mxu0 0.0
  %625 = vmatmul.mubr.f32.gmra.mrb[0].mxu0 %v255
  %v626 = vpop.f32.mrb[0].mxu0
  %v627 = vadd.f32 0.0, %v626
  %v628 = vpop.f32.mrb[0].mxu0
  %629 = vmatprep.mubr.f32.mxu0 0.0
  %630 = vmatmul.mubr.f32.gmra.mrb[0].mxu0 %v258
  %v631 = vpop.f32.mrb[0].mxu0
  %v632 = vadd.f32 0.0, %v631
  %v633 = vpop.f32.mrb[0].mxu0
  %634 = vmatprep.mubr.f32.mxu0 0.0
  %635 = vmatmul.mubr.f32.gmra.mrb[0].mxu0 %v261
  %v636 = vpop.f32.mrb[0].mxu0
  %v637 = vadd.f32 0.0, %v636
  %v638 = vpop.f32.mrb[0].mxu0
  %639 = vmatprep.mubr.f32.mxu0 0.0
  %640 = vmatmul.mubr.f32.gmra.mrb[0].mxu0 %v264
  %v641 = vpop.f32.mrb[0].mxu0
  %v642 = vadd.f32 0.0, %v641
  %v643 = vpop.f32.mrb[0].mxu0
  %644 = vmatprep.mubr.f32.mxu0 0.0
  %645 = vmatmul.mubr.f32.gmra.mrb[0].mxu0 %v267
  %v646 = vpop.f32.mrb[0].mxu0
  %v647 = vadd.f32 0.0, %v646
  %v648 = vpop.f32.mrb[0].mxu0
  %649 = vmatprep.mubr.f32.mxu0 0.0
  %650 = vmatmul.mubr.f32.gmra.mrb[0].mxu0 %v270
  %v651 = vpop.f32.mrb[0].mxu0
  %v652 = vadd.f32 0.0, %v651
  %v653 = vpop.f32.mrb[0].mxu0
  %654 = vmatprep.mubr.f32.mxu0 0.0
  %655 = vmatmul.mubr.f32.gmra.mrb[0].mxu0 %v273
  %v656 = vpop.f32.mrb[0].mxu0
  %v657 = vadd.f32 0.0, %v656
  %v658 = vpop.f32.mrb[0].mxu0
  %659 = vdwg.mxu0
  %v660 = vpack.c.bf16 %v347, %v342
  %v661 = vpack.c.bf16 %v357, %v352
  %v662 = vpack.c.bf16 %v367, %v362
  %v663 = vpack.c.bf16 %v377, %v372
  %v664 = vpack.c.bf16 %v387, %v382
  %v665 = vpack.c.bf16 %v397, %v392
  %v666 = vpack.c.bf16 %v407, %v402
  %v667 = vpack.c.bf16 %v417, %v412
  %v668 = vpack.c.bf16 %v427, %v422
  %v669 = vpack.c.bf16 %v437, %v432
  %v670 = vpack.c.bf16 %v447, %v442
  %v671 = vpack.c.bf16 %v457, %v452
  %v672 = vpack.c.bf16 %v467, %v462
  %v673 = vpack.c.bf16 %v477, %v472
  %v674 = vpack.c.bf16 %v487, %v482
  %v675 = vpack.c.bf16 %v497, %v492
  %v676 = vpack.c.bf16 %v507, %v502
  %v677 = vpack.c.bf16 %v517, %v512
  %v678 = vpack.c.bf16 %v527, %v522
  %v679 = vpack.c.bf16 %v537, %v532
  %v680 = vpack.c.bf16 %v547, %v542
  %v681 = vpack.c.bf16 %v557, %v552
  %v682 = vpack.c.bf16 %v567, %v562
  %v683 = vpack.c.bf16 %v577, %v572
  %v684 = vpack.c.bf16 %v587, %v582
  %v685 = vpack.c.bf16 %v597, %v592
  %v686 = vpack.c.bf16 %v607, %v602
  %v687 = vpack.c.bf16 %v617, %v612
  %v688 = vpack.c.bf16 %v627, %v622
  %v689 = vpack.c.bf16 %v637, %v632
  %v690 = vpack.c.bf16 %v647, %v642
  %v691 = vpack.c.bf16 %v657, %v652
  %v724 = vunpack.c.l.b16 %v660
  %v725 = vunpack.c.h.b16 %v660
  %v726 = vunpack.c.l.b16 %v661
  %v727 = vunpack.c.h.b16 %v661
  %v728 = vunpack.c.l.b16 %v662
  %v729 = vunpack.c.h.b16 %v662
  %v730 = vunpack.c.l.b16 %v663
  %v731 = vunpack.c.h.b16 %v663
  %v732 = vunpack.c.l.b16 %v664
  %v733 = vunpack.c.h.b16 %v664
  %v734 = vunpack.c.l.b16 %v665
  %v735 = vunpack.c.h.b16 %v665
  %v736 = vunpack.c.l.b16 %v666
  %v737 = vunpack.c.h.b16 %v666
  %v738 = vunpack.c.l.b16 %v667
  %v739 = vunpack.c.h.b16 %v667
  %v740 = vunpack.c.l.b16 %v668
  %v741 = vunpack.c.h.b16 %v668
  %v742 = vunpack.c.l.b16 %v669
  %v743 = vunpack.c.h.b16 %v669
  %v744 = vunpack.c.l.b16 %v670
  %v745 = vunpack.c.h.b16 %v670
  %v746 = vunpack.c.l.b16 %v671
  %v747 = vunpack.c.h.b16 %v671
  %v748 = vunpack.c.l.b16 %v672
  %v749 = vunpack.c.h.b16 %v672
  %v750 = vunpack.c.l.b16 %v673
  %v751 = vunpack.c.h.b16 %v673
  %v752 = vunpack.c.l.b16 %v674
  %v753 = vunpack.c.h.b16 %v674
  %v754 = vunpack.c.l.b16 %v675
  %v755 = vunpack.c.h.b16 %v675
  %v756 = vunpack.c.l.b16 %v676
  %v757 = vunpack.c.h.b16 %v676
  %v758 = vunpack.c.l.b16 %v677
  %v759 = vunpack.c.h.b16 %v677
  %v760 = vunpack.c.l.b16 %v678
  %v761 = vunpack.c.h.b16 %v678
  %v762 = vunpack.c.l.b16 %v679
  %v763 = vunpack.c.h.b16 %v679
  %v764 = vunpack.c.l.b16 %v680
  %v765 = vunpack.c.h.b16 %v680
  %v766 = vunpack.c.l.b16 %v681
  %v767 = vunpack.c.h.b16 %v681
  %v768 = vunpack.c.l.b16 %v682
  %v769 = vunpack.c.h.b16 %v682
  %v770 = vunpack.c.l.b16 %v683
  %v771 = vunpack.c.h.b16 %v683
  %v772 = vunpack.c.l.b16 %v684
  %v773 = vunpack.c.h.b16 %v684
  %v774 = vunpack.c.l.b16 %v685
  %v775 = vunpack.c.h.b16 %v685
  %v776 = vunpack.c.l.b16 %v686
  %v777 = vunpack.c.h.b16 %v686
  %v778 = vunpack.c.l.b16 %v687
  %v779 = vunpack.c.h.b16 %v687
  %v780 = vunpack.c.l.b16 %v688
  %v781 = vunpack.c.h.b16 %v688
  %v782 = vunpack.c.l.b16 %v689
  %v783 = vunpack.c.h.b16 %v689
  %v784 = vunpack.c.l.b16 %v690
  %v785 = vunpack.c.h.b16 %v690
  %v786 = vunpack.c.l.b16 %v691
  %v787 = vunpack.c.h.b16 %v691
  %v788 = vpack.c.b16 %v724, %v724
  %v789 = vpack.c.b16 %v725, %v725
  %v790 = vpack.c.b16 %v726, %v726
  %v791 = vpack.c.b16 %v727, %v727
  %v792 = vpack.c.b16 %v728, %v728
  %v793 = vpack.c.b16 %v729, %v729
  %v794 = vpack.c.b16 %v730, %v730
  %v795 = vpack.c.b16 %v731, %v731
  %v796 = vpack.c.b16 %v732, %v732
  %v797 = vpack.c.b16 %v733, %v733
  %v798 = vpack.c.b16 %v734, %v734
  %v799 = vpack.c.b16 %v735, %v735
  %v800 = vpack.c.b16 %v736, %v736
  %v801 = vpack.c.b16 %v737, %v737
  %v802 = vpack.c.b16 %v738, %v738
  %v803 = vpack.c.b16 %v739, %v739
  %v804 = vpack.c.b16 %v740, %v740
  %v805 = vpack.c.b16 %v741, %v741
  %v806 = vpack.c.b16 %v742, %v742
  %v807 = vpack.c.b16 %v743, %v743
  %v808 = vpack.c.b16 %v744, %v744
  %v809 = vpack.c.b16 %v745, %v745
  %v810 = vpack.c.b16 %v746, %v746
  %v811 = vpack.c.b16 %v747, %v747
  %v812 = vpack.c.b16 %v748, %v748
  %v813 = vpack.c.b16 %v749, %v749
  %v814 = vpack.c.b16 %v750, %v750
  %v815 = vpack.c.b16 %v751, %v751
  %v816 = vpack.c.b16 %v752, %v752
  %v817 = vpack.c.b16 %v753, %v753
  %v818 = vpack.c.b16 %v754, %v754
  %v819 = vpack.c.b16 %v755, %v755
  %v820 = vpack.c.b16 %v756, %v756
  %v821 = vpack.c.b16 %v757, %v757
  %v822 = vpack.c.b16 %v758, %v758
  %v823 = vpack.c.b16 %v759, %v759
  %v824 = vpack.c.b16 %v760, %v760
  %v825 = vpack.c.b16 %v761, %v761
  %v826 = vpack.c.b16 %v762, %v762
  %v827 = vpack.c.b16 %v763, %v763
  %v828 = vpack.c.b16 %v764, %v764
  %v829 = vpack.c.b16 %v765, %v765
  %v830 = vpack.c.b16 %v766, %v766
  %v831 = vpack.c.b16 %v767, %v767
  %v832 = vpack.c.b16 %v768, %v768
  %v833 = vpack.c.b16 %v769, %v769
  %v834 = vpack.c.b16 %v770, %v770
  %v835 = vpack.c.b16 %v771, %v771
  %v836 = vpack.c.b16 %v772, %v772
  %v837 = vpack.c.b16 %v773, %v773
  %v838 = vpack.c.b16 %v774, %v774
  %v839 = vpack.c.b16 %v775, %v775
  %v840 = vpack.c.b16 %v776, %v776
  %v841 = vpack.c.b16 %v777, %v777
  %v842 = vpack.c.b16 %v778, %v778
  %v843 = vpack.c.b16 %v779, %v779
  %v844 = vpack.c.b16 %v780, %v780
  %v845 = vpack.c.b16 %v781, %v781
  %v846 = vpack.c.b16 %v782, %v782
  %v847 = vpack.c.b16 %v783, %v783
  %v848 = vpack.c.b16 %v784, %v784
  %v849 = vpack.c.b16 %v785, %v785
  %v850 = vpack.c.b16 %v786, %v786
  %v851 = vpack.c.b16 %v787, %v787
  %vm916 = vcmask 257024
  %917 = vst.msk [vmem:[%s3] sm:$0xf] %vm916, %v788
  %918 = vst.msk [vmem:[%s3 + $0x4] sm:$0xf] %vm916, %v789
  %919 = vst.msk [vmem:[%s3 + $0x8] sm:$0xf] %vm916, %v790
  %920 = vst.msk [vmem:[%s3 + $0xc] sm:$0xf] %vm916, %v791
  %921 = vst.msk [vmem:[%s3 + $0x10] sm:$0xf] %vm916, %v792
  %922 = vst.msk [vmem:[%s3 + $0x14] sm:$0xf] %vm916, %v793
  %923 = vst.msk [vmem:[%s3 + $0x18] sm:$0xf] %vm916, %v794
  %924 = vst.msk [vmem:[%s3 + $0x1c] sm:$0xf] %vm916, %v795
  %925 = vst.msk [vmem:[%s3 + $0x20] sm:$0xf] %vm916, %v796
  %926 = vst.msk [vmem:[%s3 + $0x24] sm:$0xf] %vm916, %v797
  %927 = vst.msk [vmem:[%s3 + $0x28] sm:$0xf] %vm916, %v798
  %928 = vst.msk [vmem:[%s3 + $0x2c] sm:$0xf] %vm916, %v799
  %929 = vst.msk [vmem:[%s3 + $0x30] sm:$0xf] %vm916, %v800
  %930 = vst.msk [vmem:[%s3 + $0x34] sm:$0xf] %vm916, %v801
  %931 = vst.msk [vmem:[%s3 + $0x38] sm:$0xf] %vm916, %v802
  %932 = vst.msk [vmem:[%s3 + $0x3c] sm:$0xf] %vm916, %v803
  %933 = vst.msk [vmem:[%s3 + $0x40] sm:$0xf] %vm916, %v804
  %934 = vst.msk [vmem:[%s3 + $0x44] sm:$0xf] %vm916, %v805
  %935 = vst.msk [vmem:[%s3 + $0x48] sm:$0xf] %vm916, %v806
  %936 = vst.msk [vmem:[%s3 + $0x4c] sm:$0xf] %vm916, %v807
  %937 = vst.msk [vmem:[%s3 + $0x50] sm:$0xf] %vm916, %v808
  %938 = vst.msk [vmem:[%s3 + $0x54] sm:$0xf] %vm916, %v809
  %939 = vst.msk [vmem:[%s3 + $0x58] sm:$0xf] %vm916, %v810
  %940 = vst.msk [vmem:[%s3 + $0x5c] sm:$0xf] %vm916, %v811
  %941 = vst.msk [vmem:[%s3 + $0x60] sm:$0xf] %vm916, %v812
  %942 = vst.msk [vmem:[%s3 + $0x64] sm:$0xf] %vm916, %v813
  %943 = vst.msk [vmem:[%s3 + $0x68] sm:$0xf] %vm916, %v814
  %944 = vst.msk [vmem:[%s3 + $0x6c] sm:$0xf] %vm916, %v815
  %945 = vst.msk [vmem:[%s3 + $0x70] sm:$0xf] %vm916, %v816
  %946 = vst.msk [vmem:[%s3 + $0x74] sm:$0xf] %vm916, %v817
  %947 = vst.msk [vmem:[%s3 + $0x78] sm:$0xf] %vm916, %v818
  %948 = vst.msk [vmem:[%s3 + $0x7c] sm:$0xf] %vm916, %v819
  %949 = vst.msk [vmem:[%s3 + $0x80] sm:$0xf] %vm916, %v820
  %950 = vst.msk [vmem:[%s3 + $0x84] sm:$0xf] %vm916, %v821
  %951 = vst.msk [vmem:[%s3 + $0x88] sm:$0xf] %vm916, %v822
  %952 = vst.msk [vmem:[%s3 + $0x8c] sm:$0xf] %vm916, %v823
  %953 = vst.msk [vmem:[%s3 + $0x90] sm:$0xf] %vm916, %v824
  %954 = vst.msk [vmem:[%s3 + $0x94] sm:$0xf] %vm916, %v825
  %955 = vst.msk [vmem:[%s3 + $0x98] sm:$0xf] %vm916, %v826
  %956 = vst.msk [vmem:[%s3 + $0x9c] sm:$0xf] %vm916, %v827
  %957 = vst.msk [vmem:[%s3 + $0xa0] sm:$0xf] %vm916, %v828
  %958 = vst.msk [vmem:[%s3 + $0xa4] sm:$0xf] %vm916, %v829
  %959 = vst.msk [vmem:[%s3 + $0xa8] sm:$0xf] %vm916, %v830
  %960 = vst.msk [vmem:[%s3 + $0xac] sm:$0xf] %vm916, %v831
  %961 = vst.msk [vmem:[%s3 + $0xb0] sm:$0xf] %vm916, %v832
  %962 = vst.msk [vmem:[%s3 + $0xb4] sm:$0xf] %vm916, %v833
  %963 = vst.msk [vmem:[%s3 + $0xb8] sm:$0xf] %vm916, %v834
  %964 = vst.msk [vmem:[%s3 + $0xbc] sm:$0xf] %vm916, %v835
  %965 = vst.msk [vmem:[%s3 + $0xc0] sm:$0xf] %vm916, %v836
  %966 = vst.msk [vmem:[%s3 + $0xc4] sm:$0xf] %vm916, %v837
  %967 = vst.msk [vmem:[%s3 + $0xc8] sm:$0xf] %vm916, %v838
  %968 = vst.msk [vmem:[%s3 + $0xcc] sm:$0xf] %vm916, %v839
  %969 = vst.msk [vmem:[%s3 + $0xd0] sm:$0xf] %vm916, %v840
  %970 = vst.msk [vmem:[%s3 + $0xd4] sm:$0xf] %vm916, %v841
  %971 = vst.msk [vmem:[%s3 + $0xd8] sm:$0xf] %vm916, %v842
  %972 = vst.msk [vmem:[%s3 + $0xdc] sm:$0xf] %vm916, %v843
  %973 = vst.msk [vmem:[%s3 + $0xe0] sm:$0xf] %vm916, %v844
  %974 = vst.msk [vmem:[%s3 + $0xe4] sm:$0xf] %vm916, %v845
  %975 = vst.msk [vmem:[%s3 + $0xe8] sm:$0xf] %vm916, %v846
  %976 = vst.msk [vmem:[%s3 + $0xec] sm:$0xf] %vm916, %v847
  %977 = vst.msk [vmem:[%s3 + $0xf0] sm:$0xf] %vm916, %v848
  %978 = vst.msk [vmem:[%s3 + $0xf4] sm:$0xf] %vm916, %v849
  %979 = vst.msk [vmem:[%s3 + $0xf8] sm:$0xf] %vm916, %v850
  %980 = vst.msk [vmem:[%s3 + $0xfc] sm:$0xf] %vm916, %v851
  %v981 = vld [vmem:[%s2] sm:$0xff]
  %v982 = vld [vmem:[%s2 + $0x8] sm:$0xff]
  %v983 = vld [vmem:[%s2 + $0x10] sm:$0xff]
  %v984 = vld [vmem:[%s2 + $0x18] sm:$0xff]
  %vm985 = vcmask 261120
  %v987 = vsel %vm985, %v342, 0
  %v990 = vsel %vm985, %v347, 0
  %v993 = vsel %vm985, %v352, 0
  %v996 = vsel %vm985, %v357, 0
  %v999 = vsel %vm985, %v362, 0
  %v1002 = vsel %vm985, %v367, 0
  %v1005 = vsel %vm985, %v372, 0
  %v1008 = vsel %vm985, %v377, 0
  %v1011 = vsel %vm985, %v382, 0
  %v1014 = vsel %vm985, %v387, 0
  %v1017 = vsel %vm985, %v392, 0
  %v1020 = vsel %vm985, %v397, 0
  %v1023 = vsel %vm985, %v402, 0
  %v1026 = vsel %vm985, %v407, 0
  %v1029 = vsel %vm985, %v412, 0
  %v1032 = vsel %vm985, %v417, 0
  %v1035 = vsel %vm985, %v422, 0
  %v1038 = vsel %vm985, %v427, 0
  %v1041 = vsel %vm985, %v432, 0
  %v1044 = vsel %vm985, %v437, 0
  %v1047 = vsel %vm985, %v442, 0
  %v1050 = vsel %vm985, %v447, 0
  %v1053 = vsel %vm985, %v452, 0
  %v1056 = vsel %vm985, %v457, 0
  %v1059 = vsel %vm985, %v462, 0
  %v1062 = vsel %vm985, %v467, 0
  %v1065 = vsel %vm985, %v472, 0
  %v1068 = vsel %vm985, %v477, 0
  %v1071 = vsel %vm985, %v482, 0
  %v1074 = vsel %vm985, %v487, 0
  %v1077 = vsel %vm985, %v492, 0
  %v1080 = vsel %vm985, %v497, 0
  %v1083 = vsel %vm985, %v502, 0
  %v1086 = vsel %vm985, %v507, 0
  %v1089 = vsel %vm985, %v512, 0
  %v1092 = vsel %vm985, %v517, 0
  %v1095 = vsel %vm985, %v522, 0
  %v1098 = vsel %vm985, %v527, 0
  %v1101 = vsel %vm985, %v532, 0
  %v1104 = vsel %vm985, %v537, 0
  %v1107 = vsel %vm985, %v542, 0
  %v1110 = vsel %vm985, %v547, 0
  %v1113 = vsel %vm985, %v552, 0
  %v1116 = vsel %vm985, %v557, 0
  %v1119 = vsel %vm985, %v562, 0
  %v1122 = vsel %vm985, %v567, 0
  %v1125 = vsel %vm985, %v572, 0
  %v1128 = vsel %vm985, %v577, 0
  %v1131 = vsel %vm985, %v582, 0
  %v1134 = vsel %vm985, %v587, 0
  %v1137 = vsel %vm985, %v592, 0
  %v1140 = vsel %vm985, %v597, 0
  %v1143 = vsel %vm985, %v602, 0
  %v1146 = vsel %vm985, %v607, 0
  %v1149 = vsel %vm985, %v612, 0
  %v1152 = vsel %vm985, %v617, 0
  %v1155 = vsel %vm985, %v622, 0
  %v1158 = vsel %vm985, %v627, 0
  %v1161 = vsel %vm985, %v632, 0
  %v1164 = vsel %vm985, %v637, 0
  %v1167 = vsel %vm985, %v642, 0
  %v1170 = vsel %vm985, %v647, 0
  %v1173 = vsel %vm985, %v652, 0
  %v1176 = vsel %vm985, %v657, 0
  %1178 = vmatprep.subr.mxu0 0.0
  %1179 = vmatpush1.msra.mxu0 %v981
  %1180 = vmatprep.subr.mxu0 0.0
  %1181 = vmatpush1.msra.mxu0 %v982
  %1182 = vmatprep.subr.mxu0 0.0
  %1183 = vmatpush1.msra.mxu0 %v983
  %1184 = vmatprep.subr.mxu0 0.0
  %1185 = vmatpush1.msra.mxu0 %v984
  %1186 = vmatprep.subr.mxu0 0.0
  %1187 = vmatpush1.msra.mxu0 0.0
  %1188 = vmatprep.subr.mxu0 0.0
  %1189 = vmatpush1.msra.mxu0 0.0
  %1190 = vmatprep.subr.mxu0 0.0
  %1191 = vmatpush1.msra.mxu0 0.0
  %1192 = vmatprep.subr.mxu0 0.0
  %1193 = vmatpush1.msra.mxu0 0.0
  %1194 = vmatprep.subr.mxu0 0.0
  %1195 = vmatpush1.msra.mxu0 0.0
  %1196 = vmatprep.subr.mxu0 0.0
  %1197 = vmatpush1.msra.mxu0 0.0
  %1198 = vmatprep.subr.mxu0 0.0
  %1199 = vmatpush1.msra.mxu0 0.0
  %1200 = vmatprep.subr.mxu0 0.0
  %1201 = vmatpush1.msra.mxu0 0.0
  %1202 = vmatprep.subr.mxu0 0.0
  %1203 = vmatpush1.msra.mxu0 0.0
  %1204 = vmatprep.subr.mxu0 0.0
  %1205 = vmatpush1.msra.mxu0 0.0
  %1206 = vmatprep.subr.mxu0 0.0
  %1207 = vmatpush1.msra.mxu0 0.0
  %1208 = vmatprep.subr.mxu0 0.0
  %1209 = vmatpush1.msra.mxu0 0.0
  %1210 = vmatprep.subr.mxu0 0.0
  %1211 = vmatpush1.msra.mxu0 0.0
  %1212 = vmatprep.subr.mxu0 0.0
  %1213 = vmatpush1.msra.mxu0 0.0
  %1214 = vmatprep.subr.mxu0 0.0
  %1215 = vmatpush1.msra.mxu0 0.0
  %1216 = vmatprep.subr.mxu0 0.0
  %1217 = vmatpush1.msra.mxu0 0.0
  %1218 = vmatprep.subr.mxu0 0.0
  %1219 = vmatpush1.msra.mxu0 0.0
  %1220 = vmatprep.subr.mxu0 0.0
  %1221 = vmatpush1.msra.mxu0 0.0
  %1222 = vmatprep.subr.mxu0 0.0
  %1223 = vmatpush1.msra.mxu0 0.0
  %1224 = vmatprep.subr.mxu0 0.0
  %1225 = vmatpush1.msra.mxu0 0.0
  %1226 = vmatprep.subr.mxu0 0.0
  %1227 = vmatpush1.msra.mxu0 0.0
  %1228 = vmatprep.subr.mxu0 0.0
  %1229 = vmatpush1.msra.mxu0 0.0
  %1230 = vmatprep.subr.mxu0 0.0
  %1231 = vmatpush1.msra.mxu0 0.0
  %1232 = vmatprep.subr.mxu0 0.0
  %1233 = vmatpush1.msra.mxu0 0.0
  %1234 = vmatprep.subr.mxu0 0.0
  %1235 = vmatpush1.msra.mxu0 0.0
  %1236 = vmatprep.subr.mxu0 0.0
  %1237 = vmatpush1.msra.mxu0 0.0
  %1238 = vmatprep.subr.mxu0 0.0
  %1239 = vmatpush1.msra.mxu0 0.0
  %1240 = vmatprep.subr.mxu0 0.0
  %1241 = vmatpush1.msra.mxu0 0.0
  %1242 = vmatprep.mubr.f32.mxu0 0.0
  %1243 = vmatmul.mubr.f32.gmra.mrb[0].mxu0 %v987
  %v1244 = vpop.f32.mrb[0].mxu0
  %v1245 = vadd.f32 0.0, %v1244
  %v1246 = vpop.f32.mrb[0].mxu0
  %1247 = vmatprep.mubr.f32.mxu0 0.0
  %1248 = vmatmul.mubr.f32.gmra.mrb[0].mxu0 %v990
  %v1249 = vpop.f32.mrb[0].mxu0
  %v1250 = vadd.f32 0.0, %v1249
  %v1251 = vpop.f32.mrb[0].mxu0
  %1252 = vmatprep.mubr.f32.mxu0 0.0
  %1253 = vmatmul.mubr.f32.gmra.mrb[0].mxu0 %v993
  %v1254 = vpop.f32.mrb[0].mxu0
  %v1255 = vadd.f32 0.0, %v1254
  %v1256 = vpop.f32.mrb[0].mxu0
  %1257 = vmatprep.mubr.f32.mxu0 0.0
  %1258 = vmatmul.mubr.f32.gmra.mrb[0].mxu0 %v996
  %v1259 = vpop.f32.mrb[0].mxu0
  %v1260 = vadd.f32 0.0, %v1259
  %v1261 = vpop.f32.mrb[0].mxu0
  %1262 = vmatprep.mubr.f32.mxu0 0.0
  %1263 = vmatmul.mubr.f32.gmra.mrb[0].mxu0 %v999
  %v1264 = vpop.f32.mrb[0].mxu0
  %v1265 = vadd.f32 0.0, %v1264
  %v1266 = vpop.f32.mrb[0].mxu0
  %1267 = vmatprep.mubr.f32.mxu0 0.0
  %1268 = vmatmul.mubr.f32.gmra.mrb[0].mxu0 %v1002
  %v1269 = vpop.f32.mrb[0].mxu0
  %v1270 = vadd.f32 0.0, %v1269
  %v1271 = vpop.f32.mrb[0].mxu0
  %1272 = vmatprep.mubr.f32.mxu0 0.0
  %1273 = vmatmul.mubr.f32.gmra.mrb[0].mxu0 %v1005
  %v1274 = vpop.f32.mrb[0].mxu0
  %v1275 = vadd.f32 0.0, %v1274
  %v1276 = vpop.f32.mrb[0].mxu0
  %1277 = vmatprep.mubr.f32.mxu0 0.0
  %1278 = vmatmul.mubr.f32.gmra.mrb[0].mxu0 %v1008
  %v1279 = vpop.f32.mrb[0].mxu0
  %v1280 = vadd.f32 0.0, %v1279
  %v1281 = vpop.f32.mrb[0].mxu0
  %1282 = vmatprep.mubr.f32.mxu0 0.0
  %1283 = vmatmul.mubr.f32.gmra.mrb[0].mxu0 %v1011
  %v1284 = vpop.f32.mrb[0].mxu0
  %v1285 = vadd.f32 0.0, %v1284
  %v1286 = vpop.f32.mrb[0].mxu0
  %1287 = vmatprep.mubr.f32.mxu0 0.0
  %1288 = vmatmul.mubr.f32.gmra.mrb[0].mxu0 %v1014
  %v1289 = vpop.f32.mrb[0].mxu0
  %v1290 = vadd.f32 0.0, %v1289
  %v1291 = vpop.f32.mrb[0].mxu0
  %1292 = vmatprep.mubr.f32.mxu0 0.0
  %1293 = vmatmul.mubr.f32.gmra.mrb[0].mxu0 %v1017
  %v1294 = vpop.f32.mrb[0].mxu0
  %v1295 = vadd.f32 0.0, %v1294
  %v1296 = vpop.f32.mrb[0].mxu0
  %1297 = vmatprep.mubr.f32.mxu0 0.0
  %1298 = vmatmul.mubr.f32.gmra.mrb[0].mxu0 %v1020
  %v1299 = vpop.f32.mrb[0].mxu0
  %v1300 = vadd.f32 0.0, %v1299
  %v1301 = vpop.f32.mrb[0].mxu0
  %1302 = vmatprep.mubr.f32.mxu0 0.0
  %1303 = vmatmul.mubr.f32.gmra.mrb[0].mxu0 %v1023
  %v1304 = vpop.f32.mrb[0].mxu0
  %v1305 = vadd.f32 0.0, %v1304
  %v1306 = vpop.f32.mrb[0].mxu0
  %1307 = vmatprep.mubr.f32.mxu0 0.0
  %1308 = vmatmul.mubr.f32.gmra.mrb[0].mxu0 %v1026
  %v1309 = vpop.f32.mrb[0].mxu0
  %v1310 = vadd.f32 0.0, %v1309
  %v1311 = vpop.f32.mrb[0].mxu0
  %1312 = vmatprep.mubr.f32.mxu0 0.0
  %1313 = vmatmul.mubr.f32.gmra.mrb[0].mxu0 %v1029
  %v1314 = vpop.f32.mrb[0].mxu0
  %v1315 = vadd.f32 0.0, %v1314
  %v1316 = vpop.f32.mrb[0].mxu0
  %1317 = vmatprep.mubr.f32.mxu0 0.0
  %1318 = vmatmul.mubr.f32.gmra.mrb[0].mxu0 %v1032
  %v1319 = vpop.f32.mrb[0].mxu0
  %v1320 = vadd.f32 0.0, %v1319
  %v1321 = vpop.f32.mrb[0].mxu0
  %1322 = vmatprep.mubr.f32.mxu0 0.0
  %1323 = vmatmul.mubr.f32.gmra.mrb[0].mxu0 %v1035
  %v1324 = vpop.f32.mrb[0].mxu0
  %v1325 = vadd.f32 0.0, %v1324
  %v1326 = vpop.f32.mrb[0].mxu0
  %1327 = vmatprep.mubr.f32.mxu0 0.0
  %1328 = vmatmul.mubr.f32.gmra.mrb[0].mxu0 %v1038
  %v1329 = vpop.f32.mrb[0].mxu0
  %v1330 = vadd.f32 0.0, %v1329
  %v1331 = vpop.f32.mrb[0].mxu0
  %1332 = vmatprep.mubr.f32.mxu0 0.0
  %1333 = vmatmul.mubr.f32.gmra.mrb[0].mxu0 %v1041
  %v1334 = vpop.f32.mrb[0].mxu0
  %v1335 = vadd.f32 0.0, %v1334
  %v1336 = vpop.f32.mrb[0].mxu0
  %1337 = vmatprep.mubr.f32.mxu0 0.0
  %1338 = vmatmul.mubr.f32.gmra.mrb[0].mxu0 %v1044
  %v1339 = vpop.f32.mrb[0].mxu0
  %v1340 = vadd.f32 0.0, %v1339
  %v1341 = vpop.f32.mrb[0].mxu0
  %1342 = vmatprep.mubr.f32.mxu0 0.0
  %1343 = vmatmul.mubr.f32.gmra.mrb[0].mxu0 %v1047
  %v1344 = vpop.f32.mrb[0].mxu0
  %v1345 = vadd.f32 0.0, %v1344
  %v1346 = vpop.f32.mrb[0].mxu0
  %1347 = vmatprep.mubr.f32.mxu0 0.0
  %1348 = vmatmul.mubr.f32.gmra.mrb[0].mxu0 %v1050
  %v1349 = vpop.f32.mrb[0].mxu0
  %v1350 = vadd.f32 0.0, %v1349
  %v1351 = vpop.f32.mrb[0].mxu0
  %1352 = vmatprep.mubr.f32.mxu0 0.0
  %1353 = vmatmul.mubr.f32.gmra.mrb[0].mxu0 %v1053
  %v1354 = vpop.f32.mrb[0].mxu0
  %v1355 = vadd.f32 0.0, %v1354
  %v1356 = vpop.f32.mrb[0].mxu0
  %1357 = vmatprep.mubr.f32.mxu0 0.0
  %1358 = vmatmul.mubr.f32.gmra.mrb[0].mxu0 %v1056
  %v1359 = vpop.f32.mrb[0].mxu0
  %v1360 = vadd.f32 0.0, %v1359
  %v1361 = vpop.f32.mrb[0].mxu0
  %1362 = vmatprep.mubr.f32.mxu0 0.0
  %1363 = vmatmul.mubr.f32.gmra.mrb[0].mxu0 %v1059
  %v1364 = vpop.f32.mrb[0].mxu0
  %v1365 = vadd.f32 0.0, %v1364
  %v1366 = vpop.f32.mrb[0].mxu0
  %1367 = vmatprep.mubr.f32.mxu0 0.0
  %1368 = vmatmul.mubr.f32.gmra.mrb[0].mxu0 %v1062
  %v1369 = vpop.f32.mrb[0].mxu0
  %v1370 = vadd.f32 0.0, %v1369
  %v1371 = vpop.f32.mrb[0].mxu0
  %1372 = vmatprep.mubr.f32.mxu0 0.0
  %1373 = vmatmul.mubr.f32.gmra.mrb[0].mxu0 %v1065
  %v1374 = vpop.f32.mrb[0].mxu0
  %v1375 = vadd.f32 0.0, %v1374
  %v1376 = vpop.f32.mrb[0].mxu0
  %1377 = vmatprep.mubr.f32.mxu0 0.0
  %1378 = vmatmul.mubr.f32.gmra.mrb[0].mxu0 %v1068
  %v1379 = vpop.f32.mrb[0].mxu0
  %v1380 = vadd.f32 0.0, %v1379
  %v1381 = vpop.f32.mrb[0].mxu0
  %1382 = vmatprep.mubr.f32.mxu0 0.0
  %1383 = vmatmul.mubr.f32.gmra.mrb[0].mxu0 %v1071
  %v1384 = vpop.f32.mrb[0].mxu0
  %v1385 = vadd.f32 0.0, %v1384
  %v1386 = vpop.f32.mrb[0].mxu0
  %1387 = vmatprep.mubr.f32.mxu0 0.0
  %1388 = vmatmul.mubr.f32.gmra.mrb[0].mxu0 %v1074
  %v1389 = vpop.f32.mrb[0].mxu0
  %v1390 = vadd.f32 0.0, %v1389
  %v1391 = vpop.f32.mrb[0].mxu0
  %1392 = vmatprep.mubr.f32.mxu0 0.0
  %1393 = vmatmul.mubr.f32.gmra.mrb[0].mxu0 %v1077
  %v1394 = vpop.f32.mrb[0].mxu0
  %v1395 = vadd.f32 0.0, %v1394
  %v1396 = vpop.f32.mrb[0].mxu0
  %1397 = vmatprep.mubr.f32.mxu0 0.0
  %1398 = vmatmul.mubr.f32.gmra.mrb[0].mxu0 %v1080
  %v1399 = vpop.f32.mrb[0].mxu0
  %v1400 = vadd.f32 0.0, %v1399
  %v1401 = vpop.f32.mrb[0].mxu0
  %1402 = vmatprep.mubr.f32.mxu0 0.0
  %1403 = vmatmul.mubr.f32.gmra.mrb[0].mxu0 %v1083
  %v1404 = vpop.f32.mrb[0].mxu0
  %v1405 = vadd.f32 0.0, %v1404
  %v1406 = vpop.f32.mrb[0].mxu0
  %1407 = vmatprep.mubr.f32.mxu0 0.0
  %1408 = vmatmul.mubr.f32.gmra.mrb[0].mxu0 %v1086
  %v1409 = vpop.f32.mrb[0].mxu0
  %v1410 = vadd.f32 0.0, %v1409
  %v1411 = vpop.f32.mrb[0].mxu0
  %1412 = vmatprep.mubr.f32.mxu0 0.0
  %1413 = vmatmul.mubr.f32.gmra.mrb[0].mxu0 %v1089
  %v1414 = vpop.f32.mrb[0].mxu0
  %v1415 = vadd.f32 0.0, %v1414
  %v1416 = vpop.f32.mrb[0].mxu0
  %1417 = vmatprep.mubr.f32.mxu0 0.0
  %1418 = vmatmul.mubr.f32.gmra.mrb[0].mxu0 %v1092
  %v1419 = vpop.f32.mrb[0].mxu0
  %v1420 = vadd.f32 0.0, %v1419
  %v1421 = vpop.f32.mrb[0].mxu0
  %1422 = vmatprep.mubr.f32.mxu0 0.0
  %1423 = vmatmul.mubr.f32.gmra.mrb[0].mxu0 %v1095
  %v1424 = vpop.f32.mrb[0].mxu0
  %v1425 = vadd.f32 0.0, %v1424
  %v1426 = vpop.f32.mrb[0].mxu0
  %1427 = vmatprep.mubr.f32.mxu0 0.0
  %1428 = vmatmul.mubr.f32.gmra.mrb[0].mxu0 %v1098
  %v1429 = vpop.f32.mrb[0].mxu0
  %v1430 = vadd.f32 0.0, %v1429
  %v1431 = vpop.f32.mrb[0].mxu0
  %1432 = vmatprep.mubr.f32.mxu0 0.0
  %1433 = vmatmul.mubr.f32.gmra.mrb[0].mxu0 %v1101
  %v1434 = vpop.f32.mrb[0].mxu0
  %v1435 = vadd.f32 0.0, %v1434
  %v1436 = vpop.f32.mrb[0].mxu0
  %1437 = vmatprep.mubr.f32.mxu0 0.0
  %1438 = vmatmul.mubr.f32.gmra.mrb[0].mxu0 %v1104
  %v1439 = vpop.f32.mrb[0].mxu0
  %v1440 = vadd.f32 0.0, %v1439
  %v1441 = vpop.f32.mrb[0].mxu0
  %1442 = vmatprep.mubr.f32.mxu0 0.0
  %1443 = vmatmul.mubr.f32.gmra.mrb[0].mxu0 %v1107
  %v1444 = vpop.f32.mrb[0].mxu0
  %v1445 = vadd.f32 0.0, %v1444
  %v1446 = vpop.f32.mrb[0].mxu0
  %1447 = vmatprep.mubr.f32.mxu0 0.0
  %1448 = vmatmul.mubr.f32.gmra.mrb[0].mxu0 %v1110
  %v1449 = vpop.f32.mrb[0].mxu0
  %v1450 = vadd.f32 0.0, %v1449
  %v1451 = vpop.f32.mrb[0].mxu0
  %1452 = vmatprep.mubr.f32.mxu0 0.0
  %1453 = vmatmul.mubr.f32.gmra.mrb[0].mxu0 %v1113
  %v1454 = vpop.f32.mrb[0].mxu0
  %v1455 = vadd.f32 0.0, %v1454
  %v1456 = vpop.f32.mrb[0].mxu0
  %1457 = vmatprep.mubr.f32.mxu0 0.0
  %1458 = vmatmul.mubr.f32.gmra.mrb[0].mxu0 %v1116
  %v1459 = vpop.f32.mrb[0].mxu0
  %v1460 = vadd.f32 0.0, %v1459
  %v1461 = vpop.f32.mrb[0].mxu0
  %1462 = vmatprep.mubr.f32.mxu0 0.0
  %1463 = vmatmul.mubr.f32.gmra.mrb[0].mxu0 %v1119
  %v1464 = vpop.f32.mrb[0].mxu0
  %v1465 = vadd.f32 0.0, %v1464
  %v1466 = vpop.f32.mrb[0].mxu0
  %1467 = vmatprep.mubr.f32.mxu0 0.0
  %1468 = vmatmul.mubr.f32.gmra.mrb[0].mxu0 %v1122
  %v1469 = vpop.f32.mrb[0].mxu0
  %v1470 = vadd.f32 0.0, %v1469
  %v1471 = vpop.f32.mrb[0].mxu0
  %1472 = vmatprep.mubr.f32.mxu0 0.0
  %1473 = vmatmul.mubr.f32.gmra.mrb[0].mxu0 %v1125
  %v1474 = vpop.f32.mrb[0].mxu0
  %v1475 = vadd.f32 0.0, %v1474
  %v1476 = vpop.f32.mrb[0].mxu0
  %1477 = vmatprep.mubr.f32.mxu0 0.0
  %1478 = vmatmul.mubr.f32.gmra.mrb[0].mxu0 %v1128
  %v1479 = vpop.f32.mrb[0].mxu0
  %v1480 = vadd.f32 0.0, %v1479
  %v1481 = vpop.f32.mrb[0].mxu0
  %1482 = vmatprep.mubr.f32.mxu0 0.0
  %1483 = vmatmul.mubr.f32.gmra.mrb[0].mxu0 %v1131
  %v1484 = vpop.f32.mrb[0].mxu0
  %v1485 = vadd.f32 0.0, %v1484
  %v1486 = vpop.f32.mrb[0].mxu0
  %1487 = vmatprep.mubr.f32.mxu0 0.0
  %1488 = vmatmul.mubr.f32.gmra.mrb[0].mxu0 %v1134
  %v1489 = vpop.f32.mrb[0].mxu0
  %v1490 = vadd.f32 0.0, %v1489
  %v1491 = vpop.f32.mrb[0].mxu0
  %1492 = vmatprep.mubr.f32.mxu0 0.0
  %1493 = vmatmul.mubr.f32.gmra.mrb[0].mxu0 %v1137
  %v1494 = vpop.f32.mrb[0].mxu0
  %v1495 = vadd.f32 0.0, %v1494
  %v1496 = vpop.f32.mrb[0].mxu0
  %1497 = vmatprep.mubr.f32.mxu0 0.0
  %1498 = vmatmul.mubr.f32.gmra.mrb[0].mxu0 %v1140
  %v1499 = vpop.f32.mrb[0].mxu0
  %v1500 = vadd.f32 0.0, %v1499
  %v1501 = vpop.f32.mrb[0].mxu0
  %1502 = vmatprep.mubr.f32.mxu0 0.0
  %1503 = vmatmul.mubr.f32.gmra.mrb[0].mxu0 %v1143
  %v1504 = vpop.f32.mrb[0].mxu0
  %v1505 = vadd.f32 0.0, %v1504
  %v1506 = vpop.f32.mrb[0].mxu0
  %1507 = vmatprep.mubr.f32.mxu0 0.0
  %1508 = vmatmul.mubr.f32.gmra.mrb[0].mxu0 %v1146
  %v1509 = vpop.f32.mrb[0].mxu0
  %v1510 = vadd.f32 0.0, %v1509
  %v1511 = vpop.f32.mrb[0].mxu0
  %1512 = vmatprep.mubr.f32.mxu0 0.0
  %1513 = vmatmul.mubr.f32.gmra.mrb[0].mxu0 %v1149
  %v1514 = vpop.f32.mrb[0].mxu0
  %v1515 = vadd.f32 0.0, %v1514
  %v1516 = vpop.f32.mrb[0].mxu0
  %1517 = vmatprep.mubr.f32.mxu0 0.0
  %1518 = vmatmul.mubr.f32.gmra.mrb[0].mxu0 %v1152
  %v1519 = vpop.f32.mrb[0].mxu0
  %v1520 = vadd.f32 0.0, %v1519
  %v1521 = vpop.f32.mrb[0].mxu0
  %1522 = vmatprep.mubr.f32.mxu0 0.0
  %1523 = vmatmul.mubr.f32.gmra.mrb[0].mxu0 %v1155
  %v1524 = vpop.f32.mrb[0].mxu0
  %v1525 = vadd.f32 0.0, %v1524
  %v1526 = vpop.f32.mrb[0].mxu0
  %1527 = vmatprep.mubr.f32.mxu0 0.0
  %1528 = vmatmul.mubr.f32.gmra.mrb[0].mxu0 %v1158
  %v1529 = vpop.f32.mrb[0].mxu0
  %v1530 = vadd.f32 0.0, %v1529
  %v1531 = vpop.f32.mrb[0].mxu0
  %1532 = vmatprep.mubr.f32.mxu0 0.0
  %1533 = vmatmul.mubr.f32.gmra.mrb[0].mxu0 %v1161
  %v1534 = vpop.f32.mrb[0].mxu0
  %v1535 = vadd.f32 0.0, %v1534
  %v1536 = vpop.f32.mrb[0].mxu0
  %1537 = vmatprep.mubr.f32.mxu0 0.0
  %1538 = vmatmul.mubr.f32.gmra.mrb[0].mxu0 %v1164
  %v1539 = vpop.f32.mrb[0].mxu0
  %v1540 = vadd.f32 0.0, %v1539
  %v1541 = vpop.f32.mrb[0].mxu0
  %1542 = vmatprep.mubr.f32.mxu0 0.0
  %1543 = vmatmul.mubr.f32.gmra.mrb[0].mxu0 %v1167
  %v1544 = vpop.f32.mrb[0].mxu0
  %v1545 = vadd.f32 0.0, %v1544
  %v1546 = vpop.f32.mrb[0].mxu0
  %1547 = vmatprep.mubr.f32.mxu0 0.0
  %1548 = vmatmul.mubr.f32.gmra.mrb[0].mxu0 %v1170
  %v1549 = vpop.f32.mrb[0].mxu0
  %v1550 = vadd.f32 0.0, %v1549
  %v1551 = vpop.f32.mrb[0].mxu0
  %1552 = vmatprep.mubr.f32.mxu0 0.0
  %1553 = vmatmul.mubr.f32.gmra.mrb[0].mxu0 %v1173
  %v1554 = vpop.f32.mrb[0].mxu0
  %v1555 = vadd.f32 0.0, %v1554
  %v1556 = vpop.f32.mrb[0].mxu0
  %1557 = vmatprep.mubr.f32.mxu0 0.0
  %1558 = vmatmul.mubr.f32.gmra.mrb[0].mxu0 %v1176
  %v1559 = vpop.f32.mrb[0].mxu0
  %v1560 = vadd.f32 0.0, %v1559
  %v1561 = vpop.f32.mrb[0].mxu0
  %1562 = vdwg.mxu0
  %vm1563 = vcmask 15360
  %1564 = vst.msk [vmem:[%s4] sm:$0xff] %vm1563, %v1245
  %1565 = vst.msk [vmem:[%s4 + $0x8] sm:$0xff] %vm1563, %v1250
  %1566 = vst.msk [vmem:[%s4 + $0x10] sm:$0xff] %vm1563, %v1255
  %1567 = vst.msk [vmem:[%s4 + $0x18] sm:$0xff] %vm1563, %v1260
  %1568 = vst.msk [vmem:[%s4 + $0x20] sm:$0xff] %vm1563, %v1265
  %1569 = vst.msk [vmem:[%s4 + $0x28] sm:$0xff] %vm1563, %v1270
  %1570 = vst.msk [vmem:[%s4 + $0x30] sm:$0xff] %vm1563, %v1275
  %1571 = vst.msk [vmem:[%s4 + $0x38] sm:$0xff] %vm1563, %v1280
  %1572 = vst.msk [vmem:[%s4 + $0x40] sm:$0xff] %vm1563, %v1285
  %1573 = vst.msk [vmem:[%s4 + $0x48] sm:$0xff] %vm1563, %v1290
  %1574 = vst.msk [vmem:[%s4 + $0x50] sm:$0xff] %vm1563, %v1295
  %1575 = vst.msk [vmem:[%s4 + $0x58] sm:$0xff] %vm1563, %v1300
  %1576 = vst.msk [vmem:[%s4 + $0x60] sm:$0xff] %vm1563, %v1305
  %1577 = vst.msk [vmem:[%s4 + $0x68] sm:$0xff] %vm1563, %v1310
  %1578 = vst.msk [vmem:[%s4 + $0x70] sm:$0xff] %vm1563, %v1315
  %1579 = vst.msk [vmem:[%s4 + $0x78] sm:$0xff] %vm1563, %v1320
  %1580 = vst.msk [vmem:[%s4 + $0x80] sm:$0xff] %vm1563, %v1325
  %1581 = vst.msk [vmem:[%s4 + $0x88] sm:$0xff] %vm1563, %v1330
  %1582 = vst.msk [vmem:[%s4 + $0x90] sm:$0xff] %vm1563, %v1335
  %1583 = vst.msk [vmem:[%s4 + $0x98] sm:$0xff] %vm1563, %v1340
  %1584 = vst.msk [vmem:[%s4 + $0xa0] sm:$0xff] %vm1563, %v1345
  %1585 = vst.msk [vmem:[%s4 + $0xa8] sm:$0xff] %vm1563, %v1350
  %1586 = vst.msk [vmem:[%s4 + $0xb0] sm:$0xff] %vm1563, %v1355
  %1587 = vst.msk [vmem:[%s4 + $0xb8] sm:$0xff] %vm1563, %v1360
  %1588 = vst.msk [vmem:[%s4 + $0xc0] sm:$0xff] %vm1563, %v1365
  %1589 = vst.msk [vmem:[%s4 + $0xc8] sm:$0xff] %vm1563, %v1370
  %1590 = vst.msk [vmem:[%s4 + $0xd0] sm:$0xff] %vm1563, %v1375
  %1591 = vst.msk [vmem:[%s4 + $0xd8] sm:$0xff] %vm1563, %v1380
  %1592 = vst.msk [vmem:[%s4 + $0xe0] sm:$0xff] %vm1563, %v1385
  %1593 = vst.msk [vmem:[%s4 + $0xe8] sm:$0xff] %vm1563, %v1390
  %1594 = vst.msk [vmem:[%s4 + $0xf0] sm:$0xff] %vm1563, %v1395
  %1595 = vst.msk [vmem:[%s4 + $0xf8] sm:$0xff] %vm1563, %v1400
  %1596 = vst.msk [vmem:[%s4 + $0x100] sm:$0xff] %vm1563, %v1405
  %1597 = vst.msk [vmem:[%s4 + $0x108] sm:$0xff] %vm1563, %v1410
  %1598 = vst.msk [vmem:[%s4 + $0x110] sm:$0xff] %vm1563, %v1415
  %1599 = vst.msk [vmem:[%s4 + $0x118] sm:$0xff] %vm1563, %v1420
  %1600 = vst.msk [vmem:[%s4 + $0x120] sm:$0xff] %vm1563, %v1425
  %1601 = vst.msk [vmem:[%s4 + $0x128] sm:$0xff] %vm1563, %v1430
  %1602 = vst.msk [vmem:[%s4 + $0x130] sm:$0xff] %vm1563, %v1435
  %1603 = vst.msk [vmem:[%s4 + $0x138] sm:$0xff] %vm1563, %v1440
  %1604 = vst.msk [vmem:[%s4 + $0x140] sm:$0xff] %vm1563, %v1445
  %1605 = vst.msk [vmem:[%s4 + $0x148] sm:$0xff] %vm1563, %v1450
  %1606 = vst.msk [vmem:[%s4 + $0x150] sm:$0xff] %vm1563, %v1455
  %1607 = vst.msk [vmem:[%s4 + $0x158] sm:$0xff] %vm1563, %v1460
  %1608 = vst.msk [vmem:[%s4 + $0x160] sm:$0xff] %vm1563, %v1465
  %1609 = vst.msk [vmem:[%s4 + $0x168] sm:$0xff] %vm1563, %v1470
  %1610 = vst.msk [vmem:[%s4 + $0x170] sm:$0xff] %vm1563, %v1475
  %1611 = vst.msk [vmem:[%s4 + $0x178] sm:$0xff] %vm1563, %v1480
  %1612 = vst.msk [vmem:[%s4 + $0x180] sm:$0xff] %vm1563, %v1485
  %1613 = vst.msk [vmem:[%s4 + $0x188] sm:$0xff] %vm1563, %v1490
  %1614 = vst.msk [vmem:[%s4 + $0x190] sm:$0xff] %vm1563, %v1495
  %1615 = vst.msk [vmem:[%s4 + $0x198] sm:$0xff] %vm1563, %v1500
  %1616 = vst.msk [vmem:[%s4 + $0x1a0] sm:$0xff] %vm1563, %v1505
  %1617 = vst.msk [vmem:[%s4 + $0x1a8] sm:$0xff] %vm1563, %v1510
  %1618 = vst.msk [vmem:[%s4 + $0x1b0] sm:$0xff] %vm1563, %v1515
  %1619 = vst.msk [vmem:[%s4 + $0x1b8] sm:$0xff] %vm1563, %v1520
  %1620 = vst.msk [vmem:[%s4 + $0x1c0] sm:$0xff] %vm1563, %v1525
  %1621 = vst.msk [vmem:[%s4 + $0x1c8] sm:$0xff] %vm1563, %v1530
  %1622 = vst.msk [vmem:[%s4 + $0x1d0] sm:$0xff] %vm1563, %v1535
  %1623 = vst.msk [vmem:[%s4 + $0x1d8] sm:$0xff] %vm1563, %v1540
  %1624 = vst.msk [vmem:[%s4 + $0x1e0] sm:$0xff] %vm1563, %v1545
  %1625 = vst.msk [vmem:[%s4 + $0x1e8] sm:$0xff] %vm1563, %v1550
  %1626 = vst.msk [vmem:[%s4 + $0x1f0] sm:$0xff] %vm1563, %v1555
  %1627 = vst.msk [vmem:[%s4 + $0x1f8] sm:$0xff] %vm1563, %v1560
  // Predicated region
  $region14: #{tpu_custom_call.1} parent=0 // pred_check
    _
  $region15: #{tpu_custom_call.1} parent=0 // pred_check_branch
    %1629 = sbr.rel (0) target = $region17
  $region16: #{tpu_custom_call.1} parent=0 // pred_region
    _
  $region17: #{tpu_custom_call.1} parent=0 // pred_fallthru
    _
  // Predicated region
  $region18: #{tpu_custom_call.1} parent=0 // pred_check
    _
  $region19: #{tpu_custom_call.1} parent=0 // pred_check_branch
    %1631 = sbr.rel (0) target = $region21
  $region20: #{tpu_custom_call.1} parent=0 // pred_region
    _
  $region21: #{tpu_custom_call.1} parent=0 // pred_fallthru
    _
  // Predicated region
  $region22: #{tpu_custom_call.1} parent=0 // pred_check
    _
  $region23: #{tpu_custom_call.1} parent=0 // pred_check_branch
    %1633 = sbr.rel (0) target = $region25
  $region24: #{tpu_custom_call.1} parent=0 // pred_region
    _
  $region25: #{tpu_custom_call.1} parent=0 // pred_fallthru
    _
  // Predicated region
  $region26: #{tpu_custom_call.1} parent=0 // pred_check
    _
  $region27: #{tpu_custom_call.1} parent=0 // pred_check_branch
    %1635 = sbr.rel (0) target = $region29
  $region28: #{tpu_custom_call.1} parent=0 // pred_region
    _
  $region29: #{tpu_custom_call.1} parent=0 // pred_fallthru
    _

</llo_original>
